<compile_context>
chip_gen: v5e
topology: v5e:2x2
jax: 0.10.0
libtpu: 0.0.40
codegen_flags: <defaults>
</compile_context>

<pallas_src>
import jax
import jax.numpy as jnp
from jax.experimental import pallas as pl
from jax.experimental.pallas import tpu as pltpu

FEAT_IN = 2          # layer_1 in_features
HID = 10             # hidden width
SUB = 8              # sublanes per vreg
LANE = 128           # lanes per vreg
CHUNK = SUB * LANE   # batch elements per fully-packed (8,128) vreg chunk


def mlp_kernel(w1_ref, b1_ref, w2_ref, b2_ref, w3_ref, b3_ref, x_ref, o_ref):
    """x_ref: (2, S, 128) with batch packed on (sublane, lane); o_ref: (1, S, 128)."""
    # Read all weights / biases once as SMEM scalars (131 cheap scalar loads).
    w1 = [[w1_ref[o, i] for i in range(FEAT_IN)] for o in range(HID)]
    b1 = [b1_ref[o] for o in range(HID)]
    w2 = [[w2_ref[o, k] for k in range(HID)] for o in range(HID)]
    b2 = [b2_ref[o] for o in range(HID)]
    w3 = [w3_ref[0, k] for k in range(HID)]
    b3 = b3_ref[0]

    n_chunks = x_ref.shape[1] // SUB
    for c in range(n_chunks):                      # static unroll over (8,128) chunks
        sl = slice(c * SUB, (c + 1) * SUB)
        x0 = x_ref[0, sl, :]                       # (8, 128) f32, batch packed
        x1 = x_ref[1, sl, :]                       # (8, 128)

        # layer 1: 2-term scalar-broadcast FMA per hidden unit + ReLU (VPU only).
        h1 = [jnp.maximum(w1[o][0] * x0 + w1[o][1] * x1 + b1[o], 0.0)
              for o in range(HID)]

        # layers 2 + 3 fused: accumulate the single output row while each h2 row
        # is produced, so only ~12 (8,128) vregs are ever live per chunk.
        out = None
        for o in range(HID):
            acc = w2[o][0] * h1[0]
            for k in range(1, HID):
                acc = acc + w2[o][k] * h1[k]
            h2o = jnp.maximum(acc + b2[o], 0.0)    # ReLU
            term = w3[o] * h2o
            out = term if out is None else out + term

        o_ref[0, sl, :] = out + b3                 # aligned full-tile, unmasked store


def circle_model_v2(x, params, *, chunks_per_step=8):
    """Forward pass of CircleModelV2. x: (B, 2) f32 -> (B, 1) f32.

    params use the PyTorch nn.Linear layout: W (out, in), b (out,).
    """
    w1, b1, w2, b2, w3, b3 = params
    B = x.shape[0]

    n_chunks = max(1, pl.cdiv(B, CHUNK))
    chunks_per_step = max(1, min(chunks_per_step, n_chunks))
    n_steps = pl.cdiv(n_chunks, chunks_per_step)
    b_pad = n_steps * chunks_per_step * CHUNK      # zero-padded batch

    # Lay batch out on (sublane, lane): (B,2) -> (2,B) -> pad -> (2, b_pad/128, 128).
    x_t = jnp.zeros((FEAT_IN, b_pad), jnp.float32).at[:, :B].set(x.T.astype(jnp.float32))
    x_v = x_t.reshape(FEAT_IN, b_pad // LANE, LANE)

    sub_per_step = chunks_per_step * SUB
    smem = pl.BlockSpec(memory_space=pltpu.MemorySpace.SMEM)

    out_v = pl.pallas_call(
        mlp_kernel,
        out_shape=jax.ShapeDtypeStruct((1, b_pad // LANE, LANE), jnp.float32),
        grid=(n_steps,),
        in_specs=[smem, smem, smem, smem, smem, smem,
                  pl.BlockSpec((FEAT_IN, sub_per_step, LANE), lambda i: (0, i, 0))],
        out_specs=pl.BlockSpec((1, sub_per_step, LANE), lambda i: (0, i, 0)),
        compiler_params=pltpu.CompilerParams(dimension_semantics=("parallel",)),
    )(w1, b1, w2, b2, w3, b3, x_v)

    return out_v.reshape(1, b_pad)[:, :B].T        # back to (B, 1)


def init_params(key):
    """PyTorch-style default nn.Linear init: U(-1/sqrt(fan_in), 1/sqrt(fan_in)).
    Weights stored as (out_features, in_features), biases as (out_features,)."""
    def linear(key, fan_in, fan_out):
        kw, kb = jax.random.split(key)
        bound = float(1.0 / (fan_in ** 0.5))
        w = jax.random.uniform(kw, (fan_out, fan_in), jnp.float32, -bound, bound)
        b = jax.random.uniform(kb, (fan_out,), jnp.float32, -bound, bound)
        return w, b

    k1, k2, k3 = jax.random.split(key, 3)
    w1, b1 = linear(k1, 2, 10)    # layer_1: Linear(2, 10)
    w2, b2 = linear(k2, 10, 10)   # layer_2: Linear(10, 10)
    w3, b3 = linear(k3, 10, 1)    # layer_3: Linear(10, 1)
    return (w1, b1, w2, b2, w3, b3)


def reference_forward(x, params):
    w1, b1, w2, b2, w3, b3 = params
    hp = jax.lax.Precision.HIGHEST
    h = jnp.maximum(jnp.dot(x, w1.T, precision=hp) + b1, 0.0)
    h = jnp.maximum(jnp.dot(h, w2.T, precision=hp) + b2, 0.0)
    return jnp.dot(h, w3.T, precision=hp) + b3


if __name__ == "__main__":
    key = jax.random.PRNGKey(0)
    kx, kp = jax.random.split(key)

    B = 600  # small batch of 2-D points (circle classification input); exercises padding
    x = jax.random.normal(kx, (B, 2), jnp.float32)
    params = init_params(kp)

    out = jax.block_until_ready(circle_model_v2(x, params))
    ref = reference_forward(x, params)

    assert out.shape == (B, 1), out.shape
    assert jnp.allclose(out, ref, atol=1e-5, rtol=1e-5), (
        float(jnp.max(jnp.abs(out - ref))))

    print("KERNEL_OK")
</pallas_src>

<mosaic_0001>
module attributes {stable_mosaic.version = 11 : i64} {
  func.func @mlp_kernel(%arg0: i32, %arg1: memref<10x2xf32, #tpu.memory_space<smem>>, %arg2: memref<10xf32, #tpu.memory_space<smem>>, %arg3: memref<10x10xf32, #tpu.memory_space<smem>>, %arg4: memref<10xf32, #tpu.memory_space<smem>>, %arg5: memref<1x10xf32, #tpu.memory_space<smem>>, %arg6: memref<1xf32, #tpu.memory_space<smem>>, %arg7: memref<2x8x128xf32, #tpu.memory_space<vmem>>, %arg8: memref<1x8x128xf32, #tpu.memory_space<vmem>>) attributes {dimension_semantics = [#tpu.dimension_semantics<parallel>], iteration_bounds = array<i64: 1>, scalar_prefetch = 0 : i64, scratch_operands = 0 : i64, tpu.core_type = #tpu.core_type<tc>, window_params = [{transform_indices = @transform_0, window_bounds = array<i64: 10, 2>}, {transform_indices = @transform_1, window_bounds = array<i64: 10>}, {transform_indices = @transform_2, window_bounds = array<i64: 10, 10>}, {transform_indices = @transform_3, window_bounds = array<i64: 10>}, {transform_indices = @transform_4, window_bounds = array<i64: 1, 10>}, {transform_indices = @transform_5, window_bounds = array<i64: 1>}, {transform_indices = @transform_6, window_bounds = array<i64: 2, 8, 128>}, {transform_indices = @transform_7, window_bounds = array<i64: 1, 8, 128>}]} {
    %c0 = arith.constant 0 : index
    %c0_0 = arith.constant 0 : index
    %0 = memref.load %arg1[%c0, %c0_0] : memref<10x2xf32, #tpu.memory_space<smem>>
    %c0_1 = arith.constant 0 : index
    %c1 = arith.constant 1 : index
    %1 = memref.load %arg1[%c0_1, %c1] : memref<10x2xf32, #tpu.memory_space<smem>>
    %c1_2 = arith.constant 1 : index
    %c0_3 = arith.constant 0 : index
    %2 = memref.load %arg1[%c1_2, %c0_3] : memref<10x2xf32, #tpu.memory_space<smem>>
    %c1_4 = arith.constant 1 : index
    %c1_5 = arith.constant 1 : index
    %3 = memref.load %arg1[%c1_4, %c1_5] : memref<10x2xf32, #tpu.memory_space<smem>>
    %c2 = arith.constant 2 : index
    %c0_6 = arith.constant 0 : index
    %4 = memref.load %arg1[%c2, %c0_6] : memref<10x2xf32, #tpu.memory_space<smem>>
    %c2_7 = arith.constant 2 : index
    %c1_8 = arith.constant 1 : index
    %5 = memref.load %arg1[%c2_7, %c1_8] : memref<10x2xf32, #tpu.memory_space<smem>>
    %c3 = arith.constant 3 : index
    %c0_9 = arith.constant 0 : index
    %6 = memref.load %arg1[%c3, %c0_9] : memref<10x2xf32, #tpu.memory_space<smem>>
    %c3_10 = arith.constant 3 : index
    %c1_11 = arith.constant 1 : index
    %7 = memref.load %arg1[%c3_10, %c1_11] : memref<10x2xf32, #tpu.memory_space<smem>>
    %c4 = arith.constant 4 : index
    %c0_12 = arith.constant 0 : index
    %8 = memref.load %arg1[%c4, %c0_12] : memref<10x2xf32, #tpu.memory_space<smem>>
    %c4_13 = arith.constant 4 : index
    %c1_14 = arith.constant 1 : index
    %9 = memref.load %arg1[%c4_13, %c1_14] : memref<10x2xf32, #tpu.memory_space<smem>>
    %c5 = arith.constant 5 : index
    %c0_15 = arith.constant 0 : index
    %10 = memref.load %arg1[%c5, %c0_15] : memref<10x2xf32, #tpu.memory_space<smem>>
    %c5_16 = arith.constant 5 : index
    %c1_17 = arith.constant 1 : index
    %11 = memref.load %arg1[%c5_16, %c1_17] : memref<10x2xf32, #tpu.memory_space<smem>>
    %c6 = arith.constant 6 : index
    %c0_18 = arith.constant 0 : index
    %12 = memref.load %arg1[%c6, %c0_18] : memref<10x2xf32, #tpu.memory_space<smem>>
    %c6_19 = arith.constant 6 : index
    %c1_20 = arith.constant 1 : index
    %13 = memref.load %arg1[%c6_19, %c1_20] : memref<10x2xf32, #tpu.memory_space<smem>>
    %c7 = arith.constant 7 : index
    %c0_21 = arith.constant 0 : index
    %14 = memref.load %arg1[%c7, %c0_21] : memref<10x2xf32, #tpu.memory_space<smem>>
    %c7_22 = arith.constant 7 : index
    %c1_23 = arith.constant 1 : index
    %15 = memref.load %arg1[%c7_22, %c1_23] : memref<10x2xf32, #tpu.memory_space<smem>>
    %c8 = arith.constant 8 : index
    %c0_24 = arith.constant 0 : index
    %16 = memref.load %arg1[%c8, %c0_24] : memref<10x2xf32, #tpu.memory_space<smem>>
    %c8_25 = arith.constant 8 : index
    %c1_26 = arith.constant 1 : index
    %17 = memref.load %arg1[%c8_25, %c1_26] : memref<10x2xf32, #tpu.memory_space<smem>>
    %c9 = arith.constant 9 : index
    %c0_27 = arith.constant 0 : index
    %18 = memref.load %arg1[%c9, %c0_27] : memref<10x2xf32, #tpu.memory_space<smem>>
    %c9_28 = arith.constant 9 : index
    %c1_29 = arith.constant 1 : index
    %19 = memref.load %arg1[%c9_28, %c1_29] : memref<10x2xf32, #tpu.memory_space<smem>>
    %c0_30 = arith.constant 0 : index
    %20 = memref.load %arg2[%c0_30] : memref<10xf32, #tpu.memory_space<smem>>
    %c1_31 = arith.constant 1 : index
    %21 = memref.load %arg2[%c1_31] : memref<10xf32, #tpu.memory_space<smem>>
    %c2_32 = arith.constant 2 : index
    %22 = memref.load %arg2[%c2_32] : memref<10xf32, #tpu.memory_space<smem>>
    %c3_33 = arith.constant 3 : index
    %23 = memref.load %arg2[%c3_33] : memref<10xf32, #tpu.memory_space<smem>>
    %c4_34 = arith.constant 4 : index
    %24 = memref.load %arg2[%c4_34] : memref<10xf32, #tpu.memory_space<smem>>
    %c5_35 = arith.constant 5 : index
    %25 = memref.load %arg2[%c5_35] : memref<10xf32, #tpu.memory_space<smem>>
    %c6_36 = arith.constant 6 : index
    %26 = memref.load %arg2[%c6_36] : memref<10xf32, #tpu.memory_space<smem>>
    %c7_37 = arith.constant 7 : index
    %27 = memref.load %arg2[%c7_37] : memref<10xf32, #tpu.memory_space<smem>>
    %c8_38 = arith.constant 8 : index
    %28 = memref.load %arg2[%c8_38] : memref<10xf32, #tpu.memory_space<smem>>
    %c9_39 = arith.constant 9 : index
    %29 = memref.load %arg2[%c9_39] : memref<10xf32, #tpu.memory_space<smem>>
    %c0_40 = arith.constant 0 : index
    %c0_41 = arith.constant 0 : index
    %30 = memref.load %arg3[%c0_40, %c0_41] : memref<10x10xf32, #tpu.memory_space<smem>>
    %c0_42 = arith.constant 0 : index
    %c1_43 = arith.constant 1 : index
    %31 = memref.load %arg3[%c0_42, %c1_43] : memref<10x10xf32, #tpu.memory_space<smem>>
    %c0_44 = arith.constant 0 : index
    %c2_45 = arith.constant 2 : index
    %32 = memref.load %arg3[%c0_44, %c2_45] : memref<10x10xf32, #tpu.memory_space<smem>>
    %c0_46 = arith.constant 0 : index
    %c3_47 = arith.constant 3 : index
    %33 = memref.load %arg3[%c0_46, %c3_47] : memref<10x10xf32, #tpu.memory_space<smem>>
    %c0_48 = arith.constant 0 : index
    %c4_49 = arith.constant 4 : index
    %34 = memref.load %arg3[%c0_48, %c4_49] : memref<10x10xf32, #tpu.memory_space<smem>>
    %c0_50 = arith.constant 0 : index
    %c5_51 = arith.constant 5 : index
    %35 = memref.load %arg3[%c0_50, %c5_51] : memref<10x10xf32, #tpu.memory_space<smem>>
    %c0_52 = arith.constant 0 : index
    %c6_53 = arith.constant 6 : index
    %36 = memref.load %arg3[%c0_52, %c6_53] : memref<10x10xf32, #tpu.memory_space<smem>>
    %c0_54 = arith.constant 0 : index
    %c7_55 = arith.constant 7 : index
    %37 = memref.load %arg3[%c0_54, %c7_55] : memref<10x10xf32, #tpu.memory_space<smem>>
    %c0_56 = arith.constant 0 : index
    %c8_57 = arith.constant 8 : index
    %38 = memref.load %arg3[%c0_56, %c8_57] : memref<10x10xf32, #tpu.memory_space<smem>>
    %c0_58 = arith.constant 0 : index
    %c9_59 = arith.constant 9 : index
    %39 = memref.load %arg3[%c0_58, %c9_59] : memref<10x10xf32, #tpu.memory_space<smem>>
    %c1_60 = arith.constant 1 : index
    %c0_61 = arith.constant 0 : index
    %40 = memref.load %arg3[%c1_60, %c0_61] : memref<10x10xf32, #tpu.memory_space<smem>>
    %c1_62 = arith.constant 1 : index
    %c1_63 = arith.constant 1 : index
    %41 = memref.load %arg3[%c1_62, %c1_63] : memref<10x10xf32, #tpu.memory_space<smem>>
    %c1_64 = arith.constant 1 : index
    %c2_65 = arith.constant 2 : index
    %42 = memref.load %arg3[%c1_64, %c2_65] : memref<10x10xf32, #tpu.memory_space<smem>>
    %c1_66 = arith.constant 1 : index
    %c3_67 = arith.constant 3 : index
    %43 = memref.load %arg3[%c1_66, %c3_67] : memref<10x10xf32, #tpu.memory_space<smem>>
    %c1_68 = arith.constant 1 : index
    %c4_69 = arith.constant 4 : index
    %44 = memref.load %arg3[%c1_68, %c4_69] : memref<10x10xf32, #tpu.memory_space<smem>>
    %c1_70 = arith.constant 1 : index
    %c5_71 = arith.constant 5 : index
    %45 = memref.load %arg3[%c1_70, %c5_71] : memref<10x10xf32, #tpu.memory_space<smem>>
    %c1_72 = arith.constant 1 : index
    %c6_73 = arith.constant 6 : index
    %46 = memref.load %arg3[%c1_72, %c6_73] : memref<10x10xf32, #tpu.memory_space<smem>>
    %c1_74 = arith.constant 1 : index
    %c7_75 = arith.constant 7 : index
    %47 = memref.load %arg3[%c1_74, %c7_75] : memref<10x10xf32, #tpu.memory_space<smem>>
    %c1_76 = arith.constant 1 : index
    %c8_77 = arith.constant 8 : index
    %48 = memref.load %arg3[%c1_76, %c8_77] : memref<10x10xf32, #tpu.memory_space<smem>>
    %c1_78 = arith.constant 1 : index
    %c9_79 = arith.constant 9 : index
    %49 = memref.load %arg3[%c1_78, %c9_79] : memref<10x10xf32, #tpu.memory_space<smem>>
    %c2_80 = arith.constant 2 : index
    %c0_81 = arith.constant 0 : index
    %50 = memref.load %arg3[%c2_80, %c0_81] : memref<10x10xf32, #tpu.memory_space<smem>>
    %c2_82 = arith.constant 2 : index
    %c1_83 = arith.constant 1 : index
    %51 = memref.load %arg3[%c2_82, %c1_83] : memref<10x10xf32, #tpu.memory_space<smem>>
    %c2_84 = arith.constant 2 : index
    %c2_85 = arith.constant 2 : index
    %52 = memref.load %arg3[%c2_84, %c2_85] : memref<10x10xf32, #tpu.memory_space<smem>>
    %c2_86 = arith.constant 2 : index
    %c3_87 = arith.constant 3 : index
    %53 = memref.load %arg3[%c2_86, %c3_87] : memref<10x10xf32, #tpu.memory_space<smem>>
    %c2_88 = arith.constant 2 : index
    %c4_89 = arith.constant 4 : index
    %54 = memref.load %arg3[%c2_88, %c4_89] : memref<10x10xf32, #tpu.memory_space<smem>>
    %c2_90 = arith.constant 2 : index
    %c5_91 = arith.constant 5 : index
    %55 = memref.load %arg3[%c2_90, %c5_91] : memref<10x10xf32, #tpu.memory_space<smem>>
    %c2_92 = arith.constant 2 : index
    %c6_93 = arith.constant 6 : index
    %56 = memref.load %arg3[%c2_92, %c6_93] : memref<10x10xf32, #tpu.memory_space<smem>>
    %c2_94 = arith.constant 2 : index
    %c7_95 = arith.constant 7 : index
    %57 = memref.load %arg3[%c2_94, %c7_95] : memref<10x10xf32, #tpu.memory_space<smem>>
    %c2_96 = arith.constant 2 : index
    %c8_97 = arith.constant 8 : index
    %58 = memref.load %arg3[%c2_96, %c8_97] : memref<10x10xf32, #tpu.memory_space<smem>>
    %c2_98 = arith.constant 2 : index
    %c9_99 = arith.constant 9 : index
    %59 = memref.load %arg3[%c2_98, %c9_99] : memref<10x10xf32, #tpu.memory_space<smem>>
    %c3_100 = arith.constant 3 : index
    %c0_101 = arith.constant 0 : index
    %60 = memref.load %arg3[%c3_100, %c0_101] : memref<10x10xf32, #tpu.memory_space<smem>>
    %c3_102 = arith.constant 3 : index
    %c1_103 = arith.constant 1 : index
    %61 = memref.load %arg3[%c3_102, %c1_103] : memref<10x10xf32, #tpu.memory_space<smem>>
    %c3_104 = arith.constant 3 : index
    %c2_105 = arith.constant 2 : index
    %62 = memref.load %arg3[%c3_104, %c2_105] : memref<10x10xf32, #tpu.memory_space<smem>>
    %c3_106 = arith.constant 3 : index
    %c3_107 = arith.constant 3 : index
    %63 = memref.load %arg3[%c3_106, %c3_107] : memref<10x10xf32, #tpu.memory_space<smem>>
    %c3_108 = arith.constant 3 : index
    %c4_109 = arith.constant 4 : index
    %64 = memref.load %arg3[%c3_108, %c4_109] : memref<10x10xf32, #tpu.memory_space<smem>>
    %c3_110 = arith.constant 3 : index
    %c5_111 = arith.constant 5 : index
    %65 = memref.load %arg3[%c3_110, %c5_111] : memref<10x10xf32, #tpu.memory_space<smem>>
    %c3_112 = arith.constant 3 : index
    %c6_113 = arith.constant 6 : index
    %66 = memref.load %arg3[%c3_112, %c6_113] : memref<10x10xf32, #tpu.memory_space<smem>>
    %c3_114 = arith.constant 3 : index
    %c7_115 = arith.constant 7 : index
    %67 = memref.load %arg3[%c3_114, %c7_115] : memref<10x10xf32, #tpu.memory_space<smem>>
    %c3_116 = arith.constant 3 : index
    %c8_117 = arith.constant 8 : index
    %68 = memref.load %arg3[%c3_116, %c8_117] : memref<10x10xf32, #tpu.memory_space<smem>>
    %c3_118 = arith.constant 3 : index
    %c9_119 = arith.constant 9 : index
    %69 = memref.load %arg3[%c3_118, %c9_119] : memref<10x10xf32, #tpu.memory_space<smem>>
    %c4_120 = arith.constant 4 : index
    %c0_121 = arith.constant 0 : index
    %70 = memref.load %arg3[%c4_120, %c0_121] : memref<10x10xf32, #tpu.memory_space<smem>>
    %c4_122 = arith.constant 4 : index
    %c1_123 = arith.constant 1 : index
    %71 = memref.load %arg3[%c4_122, %c1_123] : memref<10x10xf32, #tpu.memory_space<smem>>
    %c4_124 = arith.constant 4 : index
    %c2_125 = arith.constant 2 : index
    %72 = memref.load %arg3[%c4_124, %c2_125] : memref<10x10xf32, #tpu.memory_space<smem>>
    %c4_126 = arith.constant 4 : index
    %c3_127 = arith.constant 3 : index
    %73 = memref.load %arg3[%c4_126, %c3_127] : memref<10x10xf32, #tpu.memory_space<smem>>
    %c4_128 = arith.constant 4 : index
    %c4_129 = arith.constant 4 : index
    %74 = memref.load %arg3[%c4_128, %c4_129] : memref<10x10xf32, #tpu.memory_space<smem>>
    %c4_130 = arith.constant 4 : index
    %c5_131 = arith.constant 5 : index
    %75 = memref.load %arg3[%c4_130, %c5_131] : memref<10x10xf32, #tpu.memory_space<smem>>
    %c4_132 = arith.constant 4 : index
    %c6_133 = arith.constant 6 : index
    %76 = memref.load %arg3[%c4_132, %c6_133] : memref<10x10xf32, #tpu.memory_space<smem>>
    %c4_134 = arith.constant 4 : index
    %c7_135 = arith.constant 7 : index
    %77 = memref.load %arg3[%c4_134, %c7_135] : memref<10x10xf32, #tpu.memory_space<smem>>
    %c4_136 = arith.constant 4 : index
    %c8_137 = arith.constant 8 : index
    %78 = memref.load %arg3[%c4_136, %c8_137] : memref<10x10xf32, #tpu.memory_space<smem>>
    %c4_138 = arith.constant 4 : index
    %c9_139 = arith.constant 9 : index
    %79 = memref.load %arg3[%c4_138, %c9_139] : memref<10x10xf32, #tpu.memory_space<smem>>
    %c5_140 = arith.constant 5 : index
    %c0_141 = arith.constant 0 : index
    %80 = memref.load %arg3[%c5_140, %c0_141] : memref<10x10xf32, #tpu.memory_space<smem>>
    %c5_142 = arith.constant 5 : index
    %c1_143 = arith.constant 1 : index
    %81 = memref.load %arg3[%c5_142, %c1_143] : memref<10x10xf32, #tpu.memory_space<smem>>
    %c5_144 = arith.constant 5 : index
    %c2_145 = arith.constant 2 : index
    %82 = memref.load %arg3[%c5_144, %c2_145] : memref<10x10xf32, #tpu.memory_space<smem>>
    %c5_146 = arith.constant 5 : index
    %c3_147 = arith.constant 3 : index
    %83 = memref.load %arg3[%c5_146, %c3_147] : memref<10x10xf32, #tpu.memory_space<smem>>
    %c5_148 = arith.constant 5 : index
    %c4_149 = arith.constant 4 : index
    %84 = memref.load %arg3[%c5_148, %c4_149] : memref<10x10xf32, #tpu.memory_space<smem>>
    %c5_150 = arith.constant 5 : index
    %c5_151 = arith.constant 5 : index
    %85 = memref.load %arg3[%c5_150, %c5_151] : memref<10x10xf32, #tpu.memory_space<smem>>
    %c5_152 = arith.constant 5 : index
    %c6_153 = arith.constant 6 : index
    %86 = memref.load %arg3[%c5_152, %c6_153] : memref<10x10xf32, #tpu.memory_space<smem>>
    %c5_154 = arith.constant 5 : index
    %c7_155 = arith.constant 7 : index
    %87 = memref.load %arg3[%c5_154, %c7_155] : memref<10x10xf32, #tpu.memory_space<smem>>
    %c5_156 = arith.constant 5 : index
    %c8_157 = arith.constant 8 : index
    %88 = memref.load %arg3[%c5_156, %c8_157] : memref<10x10xf32, #tpu.memory_space<smem>>
    %c5_158 = arith.constant 5 : index
    %c9_159 = arith.constant 9 : index
    %89 = memref.load %arg3[%c5_158, %c9_159] : memref<10x10xf32, #tpu.memory_space<smem>>
    %c6_160 = arith.constant 6 : index
    %c0_161 = arith.constant 0 : index
    %90 = memref.load %arg3[%c6_160, %c0_161] : memref<10x10xf32, #tpu.memory_space<smem>>
    %c6_162 = arith.constant 6 : index
    %c1_163 = arith.constant 1 : index
    %91 = memref.load %arg3[%c6_162, %c1_163] : memref<10x10xf32, #tpu.memory_space<smem>>
    %c6_164 = arith.constant 6 : index
    %c2_165 = arith.constant 2 : index
    %92 = memref.load %arg3[%c6_164, %c2_165] : memref<10x10xf32, #tpu.memory_space<smem>>
    %c6_166 = arith.constant 6 : index
    %c3_167 = arith.constant 3 : index
    %93 = memref.load %arg3[%c6_166, %c3_167] : memref<10x10xf32, #tpu.memory_space<smem>>
    %c6_168 = arith.constant 6 : index
    %c4_169 = arith.constant 4 : index
    %94 = memref.load %arg3[%c6_168, %c4_169] : memref<10x10xf32, #tpu.memory_space<smem>>
    %c6_170 = arith.constant 6 : index
    %c5_171 = arith.constant 5 : index
    %95 = memref.load %arg3[%c6_170, %c5_171] : memref<10x10xf32, #tpu.memory_space<smem>>
    %c6_172 = arith.constant 6 : index
    %c6_173 = arith.constant 6 : index
    %96 = memref.load %arg3[%c6_172, %c6_173] : memref<10x10xf32, #tpu.memory_space<smem>>
    %c6_174 = arith.constant 6 : index
    %c7_175 = arith.constant 7 : index
    %97 = memref.load %arg3[%c6_174, %c7_175] : memref<10x10xf32, #tpu.memory_space<smem>>
    %c6_176 = arith.constant 6 : index
    %c8_177 = arith.constant 8 : index
    %98 = memref.load %arg3[%c6_176, %c8_177] : memref<10x10xf32, #tpu.memory_space<smem>>
    %c6_178 = arith.constant 6 : index
    %c9_179 = arith.constant 9 : index
    %99 = memref.load %arg3[%c6_178, %c9_179] : memref<10x10xf32, #tpu.memory_space<smem>>
    %c7_180 = arith.constant 7 : index
    %c0_181 = arith.constant 0 : index
    %100 = memref.load %arg3[%c7_180, %c0_181] : memref<10x10xf32, #tpu.memory_space<smem>>
    %c7_182 = arith.constant 7 : index
    %c1_183 = arith.constant 1 : index
    %101 = memref.load %arg3[%c7_182, %c1_183] : memref<10x10xf32, #tpu.memory_space<smem>>
    %c7_184 = arith.constant 7 : index
    %c2_185 = arith.constant 2 : index
    %102 = memref.load %arg3[%c7_184, %c2_185] : memref<10x10xf32, #tpu.memory_space<smem>>
    %c7_186 = arith.constant 7 : index
    %c3_187 = arith.constant 3 : index
    %103 = memref.load %arg3[%c7_186, %c3_187] : memref<10x10xf32, #tpu.memory_space<smem>>
    %c7_188 = arith.constant 7 : index
    %c4_189 = arith.constant 4 : index
    %104 = memref.load %arg3[%c7_188, %c4_189] : memref<10x10xf32, #tpu.memory_space<smem>>
    %c7_190 = arith.constant 7 : index
    %c5_191 = arith.constant 5 : index
    %105 = memref.load %arg3[%c7_190, %c5_191] : memref<10x10xf32, #tpu.memory_space<smem>>
    %c7_192 = arith.constant 7 : index
    %c6_193 = arith.constant 6 : index
    %106 = memref.load %arg3[%c7_192, %c6_193] : memref<10x10xf32, #tpu.memory_space<smem>>
    %c7_194 = arith.constant 7 : index
    %c7_195 = arith.constant 7 : index
    %107 = memref.load %arg3[%c7_194, %c7_195] : memref<10x10xf32, #tpu.memory_space<smem>>
    %c7_196 = arith.constant 7 : index
    %c8_197 = arith.constant 8 : index
    %108 = memref.load %arg3[%c7_196, %c8_197] : memref<10x10xf32, #tpu.memory_space<smem>>
    %c7_198 = arith.constant 7 : index
    %c9_199 = arith.constant 9 : index
    %109 = memref.load %arg3[%c7_198, %c9_199] : memref<10x10xf32, #tpu.memory_space<smem>>
    %c8_200 = arith.constant 8 : index
    %c0_201 = arith.constant 0 : index
    %110 = memref.load %arg3[%c8_200, %c0_201] : memref<10x10xf32, #tpu.memory_space<smem>>
    %c8_202 = arith.constant 8 : index
    %c1_203 = arith.constant 1 : index
    %111 = memref.load %arg3[%c8_202, %c1_203] : memref<10x10xf32, #tpu.memory_space<smem>>
    %c8_204 = arith.constant 8 : index
    %c2_205 = arith.constant 2 : index
    %112 = memref.load %arg3[%c8_204, %c2_205] : memref<10x10xf32, #tpu.memory_space<smem>>
    %c8_206 = arith.constant 8 : index
    %c3_207 = arith.constant 3 : index
    %113 = memref.load %arg3[%c8_206, %c3_207] : memref<10x10xf32, #tpu.memory_space<smem>>
    %c8_208 = arith.constant 8 : index
    %c4_209 = arith.constant 4 : index
    %114 = memref.load %arg3[%c8_208, %c4_209] : memref<10x10xf32, #tpu.memory_space<smem>>
    %c8_210 = arith.constant 8 : index
    %c5_211 = arith.constant 5 : index
    %115 = memref.load %arg3[%c8_210, %c5_211] : memref<10x10xf32, #tpu.memory_space<smem>>
    %c8_212 = arith.constant 8 : index
    %c6_213 = arith.constant 6 : index
    %116 = memref.load %arg3[%c8_212, %c6_213] : memref<10x10xf32, #tpu.memory_space<smem>>
    %c8_214 = arith.constant 8 : index
    %c7_215 = arith.constant 7 : index
    %117 = memref.load %arg3[%c8_214, %c7_215] : memref<10x10xf32, #tpu.memory_space<smem>>
    %c8_216 = arith.constant 8 : index
    %c8_217 = arith.constant 8 : index
    %118 = memref.load %arg3[%c8_216, %c8_217] : memref<10x10xf32, #tpu.memory_space<smem>>
    %c8_218 = arith.constant 8 : index
    %c9_219 = arith.constant 9 : index
    %119 = memref.load %arg3[%c8_218, %c9_219] : memref<10x10xf32, #tpu.memory_space<smem>>
    %c9_220 = arith.constant 9 : index
    %c0_221 = arith.constant 0 : index
    %120 = memref.load %arg3[%c9_220, %c0_221] : memref<10x10xf32, #tpu.memory_space<smem>>
    %c9_222 = arith.constant 9 : index
    %c1_223 = arith.constant 1 : index
    %121 = memref.load %arg3[%c9_222, %c1_223] : memref<10x10xf32, #tpu.memory_space<smem>>
    %c9_224 = arith.constant 9 : index
    %c2_225 = arith.constant 2 : index
    %122 = memref.load %arg3[%c9_224, %c2_225] : memref<10x10xf32, #tpu.memory_space<smem>>
    %c9_226 = arith.constant 9 : index
    %c3_227 = arith.constant 3 : index
    %123 = memref.load %arg3[%c9_226, %c3_227] : memref<10x10xf32, #tpu.memory_space<smem>>
    %c9_228 = arith.constant 9 : index
    %c4_229 = arith.constant 4 : index
    %124 = memref.load %arg3[%c9_228, %c4_229] : memref<10x10xf32, #tpu.memory_space<smem>>
    %c9_230 = arith.constant 9 : index
    %c5_231 = arith.constant 5 : index
    %125 = memref.load %arg3[%c9_230, %c5_231] : memref<10x10xf32, #tpu.memory_space<smem>>
    %c9_232 = arith.constant 9 : index
    %c6_233 = arith.constant 6 : index
    %126 = memref.load %arg3[%c9_232, %c6_233] : memref<10x10xf32, #tpu.memory_space<smem>>
    %c9_234 = arith.constant 9 : index
    %c7_235 = arith.constant 7 : index
    %127 = memref.load %arg3[%c9_234, %c7_235] : memref<10x10xf32, #tpu.memory_space<smem>>
    %c9_236 = arith.constant 9 : index
    %c8_237 = arith.constant 8 : index
    %128 = memref.load %arg3[%c9_236, %c8_237] : memref<10x10xf32, #tpu.memory_space<smem>>
    %c9_238 = arith.constant 9 : index
    %c9_239 = arith.constant 9 : index
    %129 = memref.load %arg3[%c9_238, %c9_239] : memref<10x10xf32, #tpu.memory_space<smem>>
    %c0_240 = arith.constant 0 : index
    %130 = memref.load %arg4[%c0_240] : memref<10xf32, #tpu.memory_space<smem>>
    %c1_241 = arith.constant 1 : index
    %131 = memref.load %arg4[%c1_241] : memref<10xf32, #tpu.memory_space<smem>>
    %c2_242 = arith.constant 2 : index
    %132 = memref.load %arg4[%c2_242] : memref<10xf32, #tpu.memory_space<smem>>
    %c3_243 = arith.constant 3 : index
    %133 = memref.load %arg4[%c3_243] : memref<10xf32, #tpu.memory_space<smem>>
    %c4_244 = arith.constant 4 : index
    %134 = memref.load %arg4[%c4_244] : memref<10xf32, #tpu.memory_space<smem>>
    %c5_245 = arith.constant 5 : index
    %135 = memref.load %arg4[%c5_245] : memref<10xf32, #tpu.memory_space<smem>>
    %c6_246 = arith.constant 6 : index
    %136 = memref.load %arg4[%c6_246] : memref<10xf32, #tpu.memory_space<smem>>
    %c7_247 = arith.constant 7 : index
    %137 = memref.load %arg4[%c7_247] : memref<10xf32, #tpu.memory_space<smem>>
    %c8_248 = arith.constant 8 : index
    %138 = memref.load %arg4[%c8_248] : memref<10xf32, #tpu.memory_space<smem>>
    %c9_249 = arith.constant 9 : index
    %139 = memref.load %arg4[%c9_249] : memref<10xf32, #tpu.memory_space<smem>>
    %c0_250 = arith.constant 0 : index
    %c0_251 = arith.constant 0 : index
    %140 = memref.load %arg5[%c0_250, %c0_251] : memref<1x10xf32, #tpu.memory_space<smem>>
    %c0_252 = arith.constant 0 : index
    %c1_253 = arith.constant 1 : index
    %141 = memref.load %arg5[%c0_252, %c1_253] : memref<1x10xf32, #tpu.memory_space<smem>>
    %c0_254 = arith.constant 0 : index
    %c2_255 = arith.constant 2 : index
    %142 = memref.load %arg5[%c0_254, %c2_255] : memref<1x10xf32, #tpu.memory_space<smem>>
    %c0_256 = arith.constant 0 : index
    %c3_257 = arith.constant 3 : index
    %143 = memref.load %arg5[%c0_256, %c3_257] : memref<1x10xf32, #tpu.memory_space<smem>>
    %c0_258 = arith.constant 0 : index
    %c4_259 = arith.constant 4 : index
    %144 = memref.load %arg5[%c0_258, %c4_259] : memref<1x10xf32, #tpu.memory_space<smem>>
    %c0_260 = arith.constant 0 : index
    %c5_261 = arith.constant 5 : index
    %145 = memref.load %arg5[%c0_260, %c5_261] : memref<1x10xf32, #tpu.memory_space<smem>>
    %c0_262 = arith.constant 0 : index
    %c6_263 = arith.constant 6 : index
    %146 = memref.load %arg5[%c0_262, %c6_263] : memref<1x10xf32, #tpu.memory_space<smem>>
    %c0_264 = arith.constant 0 : index
    %c7_265 = arith.constant 7 : index
    %147 = memref.load %arg5[%c0_264, %c7_265] : memref<1x10xf32, #tpu.memory_space<smem>>
    %c0_266 = arith.constant 0 : index
    %c8_267 = arith.constant 8 : index
    %148 = memref.load %arg5[%c0_266, %c8_267] : memref<1x10xf32, #tpu.memory_space<smem>>
    %c0_268 = arith.constant 0 : index
    %c9_269 = arith.constant 9 : index
    %149 = memref.load %arg5[%c0_268, %c9_269] : memref<1x10xf32, #tpu.memory_space<smem>>
    %c0_270 = arith.constant 0 : index
    %150 = memref.load %arg6[%c0_270] : memref<1xf32, #tpu.memory_space<smem>>
    %c0_271 = arith.constant 0 : index
    %c0_272 = arith.constant 0 : index
    %c0_273 = arith.constant 0 : index
    %151 = vector.load %arg7[%c0_271, %c0_272, %c0_273] : memref<2x8x128xf32, #tpu.memory_space<vmem>>, vector<1x8x128xf32>
    %152 = vector.shape_cast %151 : vector<1x8x128xf32> to vector<8x128xf32>
    %c1_274 = arith.constant 1 : index
    %c0_275 = arith.constant 0 : index
    %c0_276 = arith.constant 0 : index
    %153 = vector.load %arg7[%c1_274, %c0_275, %c0_276] : memref<2x8x128xf32, #tpu.memory_space<vmem>>, vector<1x8x128xf32>
    %154 = vector.shape_cast %153 : vector<1x8x128xf32> to vector<8x128xf32>
    %155 = vector.broadcast %0 : f32 to vector<8x128xf32>
    %156 = arith.mulf %155, %152 : vector<8x128xf32>
    %157 = vector.broadcast %1 : f32 to vector<8x128xf32>
    %158 = arith.mulf %157, %154 : vector<8x128xf32>
    %159 = arith.addf %156, %158 : vector<8x128xf32>
    %160 = vector.broadcast %20 : f32 to vector<8x128xf32>
    %161 = arith.addf %159, %160 : vector<8x128xf32>
    %cst = arith.constant 0.000000e+00 : f32
    %162 = vector.broadcast %cst : f32 to vector<8x128xf32>
    %163 = arith.maximumf %161, %162 : vector<8x128xf32>
    %164 = vector.broadcast %2 : f32 to vector<8x128xf32>
    %165 = arith.mulf %164, %152 : vector<8x128xf32>
    %166 = vector.broadcast %3 : f32 to vector<8x128xf32>
    %167 = arith.mulf %166, %154 : vector<8x128xf32>
    %168 = arith.addf %165, %167 : vector<8x128xf32>
    %169 = vector.broadcast %21 : f32 to vector<8x128xf32>
    %170 = arith.addf %168, %169 : vector<8x128xf32>
    %cst_277 = arith.constant 0.000000e+00 : f32
    %171 = vector.broadcast %cst_277 : f32 to vector<8x128xf32>
    %172 = arith.maximumf %170, %171 : vector<8x128xf32>
    %173 = vector.broadcast %4 : f32 to vector<8x128xf32>
    %174 = arith.mulf %173, %152 : vector<8x128xf32>
    %175 = vector.broadcast %5 : f32 to vector<8x128xf32>
    %176 = arith.mulf %175, %154 : vector<8x128xf32>
    %177 = arith.addf %174, %176 : vector<8x128xf32>
    %178 = vector.broadcast %22 : f32 to vector<8x128xf32>
    %179 = arith.addf %177, %178 : vector<8x128xf32>
    %cst_278 = arith.constant 0.000000e+00 : f32
    %180 = vector.broadcast %cst_278 : f32 to vector<8x128xf32>
    %181 = arith.maximumf %179, %180 : vector<8x128xf32>
    %182 = vector.broadcast %6 : f32 to vector<8x128xf32>
    %183 = arith.mulf %182, %152 : vector<8x128xf32>
    %184 = vector.broadcast %7 : f32 to vector<8x128xf32>
    %185 = arith.mulf %184, %154 : vector<8x128xf32>
    %186 = arith.addf %183, %185 : vector<8x128xf32>
    %187 = vector.broadcast %23 : f32 to vector<8x128xf32>
    %188 = arith.addf %186, %187 : vector<8x128xf32>
    %cst_279 = arith.constant 0.000000e+00 : f32
    %189 = vector.broadcast %cst_279 : f32 to vector<8x128xf32>
    %190 = arith.maximumf %188, %189 : vector<8x128xf32>
    %191 = vector.broadcast %8 : f32 to vector<8x128xf32>
    %192 = arith.mulf %191, %152 : vector<8x128xf32>
    %193 = vector.broadcast %9 : f32 to vector<8x128xf32>
    %194 = arith.mulf %193, %154 : vector<8x128xf32>
    %195 = arith.addf %192, %194 : vector<8x128xf32>
    %196 = vector.broadcast %24 : f32 to vector<8x128xf32>
    %197 = arith.addf %195, %196 : vector<8x128xf32>
    %cst_280 = arith.constant 0.000000e+00 : f32
    %198 = vector.broadcast %cst_280 : f32 to vector<8x128xf32>
    %199 = arith.maximumf %197, %198 : vector<8x128xf32>
    %200 = vector.broadcast %10 : f32 to vector<8x128xf32>
    %201 = arith.mulf %200, %152 : vector<8x128xf32>
    %202 = vector.broadcast %11 : f32 to vector<8x128xf32>
    %203 = arith.mulf %202, %154 : vector<8x128xf32>
    %204 = arith.addf %201, %203 : vector<8x128xf32>
    %205 = vector.broadcast %25 : f32 to vector<8x128xf32>
    %206 = arith.addf %204, %205 : vector<8x128xf32>
    %cst_281 = arith.constant 0.000000e+00 : f32
    %207 = vector.broadcast %cst_281 : f32 to vector<8x128xf32>
    %208 = arith.maximumf %206, %207 : vector<8x128xf32>
    %209 = vector.broadcast %12 : f32 to vector<8x128xf32>
    %210 = arith.mulf %209, %152 : vector<8x128xf32>
    %211 = vector.broadcast %13 : f32 to vector<8x128xf32>
    %212 = arith.mulf %211, %154 : vector<8x128xf32>
    %213 = arith.addf %210, %212 : vector<8x128xf32>
    %214 = vector.broadcast %26 : f32 to vector<8x128xf32>
    %215 = arith.addf %213, %214 : vector<8x128xf32>
    %cst_282 = arith.constant 0.000000e+00 : f32
    %216 = vector.broadcast %cst_282 : f32 to vector<8x128xf32>
    %217 = arith.maximumf %215, %216 : vector<8x128xf32>
    %218 = vector.broadcast %14 : f32 to vector<8x128xf32>
    %219 = arith.mulf %218, %152 : vector<8x128xf32>
    %220 = vector.broadcast %15 : f32 to vector<8x128xf32>
    %221 = arith.mulf %220, %154 : vector<8x128xf32>
    %222 = arith.addf %219, %221 : vector<8x128xf32>
    %223 = vector.broadcast %27 : f32 to vector<8x128xf32>
    %224 = arith.addf %222, %223 : vector<8x128xf32>
    %cst_283 = arith.constant 0.000000e+00 : f32
    %225 = vector.broadcast %cst_283 : f32 to vector<8x128xf32>
    %226 = arith.maximumf %224, %225 : vector<8x128xf32>
    %227 = vector.broadcast %16 : f32 to vector<8x128xf32>
    %228 = arith.mulf %227, %152 : vector<8x128xf32>
    %229 = vector.broadcast %17 : f32 to vector<8x128xf32>
    %230 = arith.mulf %229, %154 : vector<8x128xf32>
    %231 = arith.addf %228, %230 : vector<8x128xf32>
    %232 = vector.broadcast %28 : f32 to vector<8x128xf32>
    %233 = arith.addf %231, %232 : vector<8x128xf32>
    %cst_284 = arith.constant 0.000000e+00 : f32
    %234 = vector.broadcast %cst_284 : f32 to vector<8x128xf32>
    %235 = arith.maximumf %233, %234 : vector<8x128xf32>
    %236 = vector.broadcast %18 : f32 to vector<8x128xf32>
    %237 = arith.mulf %236, %152 : vector<8x128xf32>
    %238 = vector.broadcast %19 : f32 to vector<8x128xf32>
    %239 = arith.mulf %238, %154 : vector<8x128xf32>
    %240 = arith.addf %237, %239 : vector<8x128xf32>
    %241 = vector.broadcast %29 : f32 to vector<8x128xf32>
    %242 = arith.addf %240, %241 : vector<8x128xf32>
    %cst_285 = arith.constant 0.000000e+00 : f32
    %243 = vector.broadcast %cst_285 : f32 to vector<8x128xf32>
    %244 = arith.maximumf %242, %243 : vector<8x128xf32>
    %245 = vector.broadcast %30 : f32 to vector<8x128xf32>
    %246 = arith.mulf %245, %163 : vector<8x128xf32>
    %247 = vector.broadcast %31 : f32 to vector<8x128xf32>
    %248 = arith.mulf %247, %172 : vector<8x128xf32>
    %249 = arith.addf %246, %248 : vector<8x128xf32>
    %250 = vector.broadcast %32 : f32 to vector<8x128xf32>
    %251 = arith.mulf %250, %181 : vector<8x128xf32>
    %252 = arith.addf %249, %251 : vector<8x128xf32>
    %253 = vector.broadcast %33 : f32 to vector<8x128xf32>
    %254 = arith.mulf %253, %190 : vector<8x128xf32>
    %255 = arith.addf %252, %254 : vector<8x128xf32>
    %256 = vector.broadcast %34 : f32 to vector<8x128xf32>
    %257 = arith.mulf %256, %199 : vector<8x128xf32>
    %258 = arith.addf %255, %257 : vector<8x128xf32>
    %259 = vector.broadcast %35 : f32 to vector<8x128xf32>
    %260 = arith.mulf %259, %208 : vector<8x128xf32>
    %261 = arith.addf %258, %260 : vector<8x128xf32>
    %262 = vector.broadcast %36 : f32 to vector<8x128xf32>
    %263 = arith.mulf %262, %217 : vector<8x128xf32>
    %264 = arith.addf %261, %263 : vector<8x128xf32>
    %265 = vector.broadcast %37 : f32 to vector<8x128xf32>
    %266 = arith.mulf %265, %226 : vector<8x128xf32>
    %267 = arith.addf %264, %266 : vector<8x128xf32>
    %268 = vector.broadcast %38 : f32 to vector<8x128xf32>
    %269 = arith.mulf %268, %235 : vector<8x128xf32>
    %270 = arith.addf %267, %269 : vector<8x128xf32>
    %271 = vector.broadcast %39 : f32 to vector<8x128xf32>
    %272 = arith.mulf %271, %244 : vector<8x128xf32>
    %273 = arith.addf %270, %272 : vector<8x128xf32>
    %274 = vector.broadcast %130 : f32 to vector<8x128xf32>
    %275 = arith.addf %273, %274 : vector<8x128xf32>
    %cst_286 = arith.constant 0.000000e+00 : f32
    %276 = vector.broadcast %cst_286 : f32 to vector<8x128xf32>
    %277 = arith.maximumf %275, %276 : vector<8x128xf32>
    %278 = vector.broadcast %140 : f32 to vector<8x128xf32>
    %279 = arith.mulf %278, %277 : vector<8x128xf32>
    %280 = vector.broadcast %40 : f32 to vector<8x128xf32>
    %281 = arith.mulf %280, %163 : vector<8x128xf32>
    %282 = vector.broadcast %41 : f32 to vector<8x128xf32>
    %283 = arith.mulf %282, %172 : vector<8x128xf32>
    %284 = arith.addf %281, %283 : vector<8x128xf32>
    %285 = vector.broadcast %42 : f32 to vector<8x128xf32>
    %286 = arith.mulf %285, %181 : vector<8x128xf32>
    %287 = arith.addf %284, %286 : vector<8x128xf32>
    %288 = vector.broadcast %43 : f32 to vector<8x128xf32>
    %289 = arith.mulf %288, %190 : vector<8x128xf32>
    %290 = arith.addf %287, %289 : vector<8x128xf32>
    %291 = vector.broadcast %44 : f32 to vector<8x128xf32>
    %292 = arith.mulf %291, %199 : vector<8x128xf32>
    %293 = arith.addf %290, %292 : vector<8x128xf32>
    %294 = vector.broadcast %45 : f32 to vector<8x128xf32>
    %295 = arith.mulf %294, %208 : vector<8x128xf32>
    %296 = arith.addf %293, %295 : vector<8x128xf32>
    %297 = vector.broadcast %46 : f32 to vector<8x128xf32>
    %298 = arith.mulf %297, %217 : vector<8x128xf32>
    %299 = arith.addf %296, %298 : vector<8x128xf32>
    %300 = vector.broadcast %47 : f32 to vector<8x128xf32>
    %301 = arith.mulf %300, %226 : vector<8x128xf32>
    %302 = arith.addf %299, %301 : vector<8x128xf32>
    %303 = vector.broadcast %48 : f32 to vector<8x128xf32>
    %304 = arith.mulf %303, %235 : vector<8x128xf32>
    %305 = arith.addf %302, %304 : vector<8x128xf32>
    %306 = vector.broadcast %49 : f32 to vector<8x128xf32>
    %307 = arith.mulf %306, %244 : vector<8x128xf32>
    %308 = arith.addf %305, %307 : vector<8x128xf32>
    %309 = vector.broadcast %131 : f32 to vector<8x128xf32>
    %310 = arith.addf %308, %309 : vector<8x128xf32>
    %cst_287 = arith.constant 0.000000e+00 : f32
    %311 = vector.broadcast %cst_287 : f32 to vector<8x128xf32>
    %312 = arith.maximumf %310, %311 : vector<8x128xf32>
    %313 = vector.broadcast %141 : f32 to vector<8x128xf32>
    %314 = arith.mulf %313, %312 : vector<8x128xf32>
    %315 = arith.addf %279, %314 : vector<8x128xf32>
    %316 = vector.broadcast %50 : f32 to vector<8x128xf32>
    %317 = arith.mulf %316, %163 : vector<8x128xf32>
    %318 = vector.broadcast %51 : f32 to vector<8x128xf32>
    %319 = arith.mulf %318, %172 : vector<8x128xf32>
    %320 = arith.addf %317, %319 : vector<8x128xf32>
    %321 = vector.broadcast %52 : f32 to vector<8x128xf32>
    %322 = arith.mulf %321, %181 : vector<8x128xf32>
    %323 = arith.addf %320, %322 : vector<8x128xf32>
    %324 = vector.broadcast %53 : f32 to vector<8x128xf32>
    %325 = arith.mulf %324, %190 : vector<8x128xf32>
    %326 = arith.addf %323, %325 : vector<8x128xf32>
    %327 = vector.broadcast %54 : f32 to vector<8x128xf32>
    %328 = arith.mulf %327, %199 : vector<8x128xf32>
    %329 = arith.addf %326, %328 : vector<8x128xf32>
    %330 = vector.broadcast %55 : f32 to vector<8x128xf32>
    %331 = arith.mulf %330, %208 : vector<8x128xf32>
    %332 = arith.addf %329, %331 : vector<8x128xf32>
    %333 = vector.broadcast %56 : f32 to vector<8x128xf32>
    %334 = arith.mulf %333, %217 : vector<8x128xf32>
    %335 = arith.addf %332, %334 : vector<8x128xf32>
    %336 = vector.broadcast %57 : f32 to vector<8x128xf32>
    %337 = arith.mulf %336, %226 : vector<8x128xf32>
    %338 = arith.addf %335, %337 : vector<8x128xf32>
    %339 = vector.broadcast %58 : f32 to vector<8x128xf32>
    %340 = arith.mulf %339, %235 : vector<8x128xf32>
    %341 = arith.addf %338, %340 : vector<8x128xf32>
    %342 = vector.broadcast %59 : f32 to vector<8x128xf32>
    %343 = arith.mulf %342, %244 : vector<8x128xf32>
    %344 = arith.addf %341, %343 : vector<8x128xf32>
    %345 = vector.broadcast %132 : f32 to vector<8x128xf32>
    %346 = arith.addf %344, %345 : vector<8x128xf32>
    %cst_288 = arith.constant 0.000000e+00 : f32
    %347 = vector.broadcast %cst_288 : f32 to vector<8x128xf32>
    %348 = arith.maximumf %346, %347 : vector<8x128xf32>
    %349 = vector.broadcast %142 : f32 to vector<8x128xf32>
    %350 = arith.mulf %349, %348 : vector<8x128xf32>
    %351 = arith.addf %315, %350 : vector<8x128xf32>
    %352 = vector.broadcast %60 : f32 to vector<8x128xf32>
    %353 = arith.mulf %352, %163 : vector<8x128xf32>
    %354 = vector.broadcast %61 : f32 to vector<8x128xf32>
    %355 = arith.mulf %354, %172 : vector<8x128xf32>
    %356 = arith.addf %353, %355 : vector<8x128xf32>
    %357 = vector.broadcast %62 : f32 to vector<8x128xf32>
    %358 = arith.mulf %357, %181 : vector<8x128xf32>
    %359 = arith.addf %356, %358 : vector<8x128xf32>
    %360 = vector.broadcast %63 : f32 to vector<8x128xf32>
    %361 = arith.mulf %360, %190 : vector<8x128xf32>
    %362 = arith.addf %359, %361 : vector<8x128xf32>
    %363 = vector.broadcast %64 : f32 to vector<8x128xf32>
    %364 = arith.mulf %363, %199 : vector<8x128xf32>
    %365 = arith.addf %362, %364 : vector<8x128xf32>
    %366 = vector.broadcast %65 : f32 to vector<8x128xf32>
    %367 = arith.mulf %366, %208 : vector<8x128xf32>
    %368 = arith.addf %365, %367 : vector<8x128xf32>
    %369 = vector.broadcast %66 : f32 to vector<8x128xf32>
    %370 = arith.mulf %369, %217 : vector<8x128xf32>
    %371 = arith.addf %368, %370 : vector<8x128xf32>
    %372 = vector.broadcast %67 : f32 to vector<8x128xf32>
    %373 = arith.mulf %372, %226 : vector<8x128xf32>
    %374 = arith.addf %371, %373 : vector<8x128xf32>
    %375 = vector.broadcast %68 : f32 to vector<8x128xf32>
    %376 = arith.mulf %375, %235 : vector<8x128xf32>
    %377 = arith.addf %374, %376 : vector<8x128xf32>
    %378 = vector.broadcast %69 : f32 to vector<8x128xf32>
    %379 = arith.mulf %378, %244 : vector<8x128xf32>
    %380 = arith.addf %377, %379 : vector<8x128xf32>
    %381 = vector.broadcast %133 : f32 to vector<8x128xf32>
    %382 = arith.addf %380, %381 : vector<8x128xf32>
    %cst_289 = arith.constant 0.000000e+00 : f32
    %383 = vector.broadcast %cst_289 : f32 to vector<8x128xf32>
    %384 = arith.maximumf %382, %383 : vector<8x128xf32>
    %385 = vector.broadcast %143 : f32 to vector<8x128xf32>
    %386 = arith.mulf %385, %384 : vector<8x128xf32>
    %387 = arith.addf %351, %386 : vector<8x128xf32>
    %388 = vector.broadcast %70 : f32 to vector<8x128xf32>
    %389 = arith.mulf %388, %163 : vector<8x128xf32>
    %390 = vector.broadcast %71 : f32 to vector<8x128xf32>
    %391 = arith.mulf %390, %172 : vector<8x128xf32>
    %392 = arith.addf %389, %391 : vector<8x128xf32>
    %393 = vector.broadcast %72 : f32 to vector<8x128xf32>
    %394 = arith.mulf %393, %181 : vector<8x128xf32>
    %395 = arith.addf %392, %394 : vector<8x128xf32>
    %396 = vector.broadcast %73 : f32 to vector<8x128xf32>
    %397 = arith.mulf %396, %190 : vector<8x128xf32>
    %398 = arith.addf %395, %397 : vector<8x128xf32>
    %399 = vector.broadcast %74 : f32 to vector<8x128xf32>
    %400 = arith.mulf %399, %199 : vector<8x128xf32>
    %401 = arith.addf %398, %400 : vector<8x128xf32>
    %402 = vector.broadcast %75 : f32 to vector<8x128xf32>
    %403 = arith.mulf %402, %208 : vector<8x128xf32>
    %404 = arith.addf %401, %403 : vector<8x128xf32>
    %405 = vector.broadcast %76 : f32 to vector<8x128xf32>
    %406 = arith.mulf %405, %217 : vector<8x128xf32>
    %407 = arith.addf %404, %406 : vector<8x128xf32>
    %408 = vector.broadcast %77 : f32 to vector<8x128xf32>
    %409 = arith.mulf %408, %226 : vector<8x128xf32>
    %410 = arith.addf %407, %409 : vector<8x128xf32>
    %411 = vector.broadcast %78 : f32 to vector<8x128xf32>
    %412 = arith.mulf %411, %235 : vector<8x128xf32>
    %413 = arith.addf %410, %412 : vector<8x128xf32>
    %414 = vector.broadcast %79 : f32 to vector<8x128xf32>
    %415 = arith.mulf %414, %244 : vector<8x128xf32>
    %416 = arith.addf %413, %415 : vector<8x128xf32>
    %417 = vector.broadcast %134 : f32 to vector<8x128xf32>
    %418 = arith.addf %416, %417 : vector<8x128xf32>
    %cst_290 = arith.constant 0.000000e+00 : f32
    %419 = vector.broadcast %cst_290 : f32 to vector<8x128xf32>
    %420 = arith.maximumf %418, %419 : vector<8x128xf32>
    %421 = vector.broadcast %144 : f32 to vector<8x128xf32>
    %422 = arith.mulf %421, %420 : vector<8x128xf32>
    %423 = arith.addf %387, %422 : vector<8x128xf32>
    %424 = vector.broadcast %80 : f32 to vector<8x128xf32>
    %425 = arith.mulf %424, %163 : vector<8x128xf32>
    %426 = vector.broadcast %81 : f32 to vector<8x128xf32>
    %427 = arith.mulf %426, %172 : vector<8x128xf32>
    %428 = arith.addf %425, %427 : vector<8x128xf32>
    %429 = vector.broadcast %82 : f32 to vector<8x128xf32>
    %430 = arith.mulf %429, %181 : vector<8x128xf32>
    %431 = arith.addf %428, %430 : vector<8x128xf32>
    %432 = vector.broadcast %83 : f32 to vector<8x128xf32>
    %433 = arith.mulf %432, %190 : vector<8x128xf32>
    %434 = arith.addf %431, %433 : vector<8x128xf32>
    %435 = vector.broadcast %84 : f32 to vector<8x128xf32>
    %436 = arith.mulf %435, %199 : vector<8x128xf32>
    %437 = arith.addf %434, %436 : vector<8x128xf32>
    %438 = vector.broadcast %85 : f32 to vector<8x128xf32>
    %439 = arith.mulf %438, %208 : vector<8x128xf32>
    %440 = arith.addf %437, %439 : vector<8x128xf32>
    %441 = vector.broadcast %86 : f32 to vector<8x128xf32>
    %442 = arith.mulf %441, %217 : vector<8x128xf32>
    %443 = arith.addf %440, %442 : vector<8x128xf32>
    %444 = vector.broadcast %87 : f32 to vector<8x128xf32>
    %445 = arith.mulf %444, %226 : vector<8x128xf32>
    %446 = arith.addf %443, %445 : vector<8x128xf32>
    %447 = vector.broadcast %88 : f32 to vector<8x128xf32>
    %448 = arith.mulf %447, %235 : vector<8x128xf32>
    %449 = arith.addf %446, %448 : vector<8x128xf32>
    %450 = vector.broadcast %89 : f32 to vector<8x128xf32>
    %451 = arith.mulf %450, %244 : vector<8x128xf32>
    %452 = arith.addf %449, %451 : vector<8x128xf32>
    %453 = vector.broadcast %135 : f32 to vector<8x128xf32>
    %454 = arith.addf %452, %453 : vector<8x128xf32>
    %cst_291 = arith.constant 0.000000e+00 : f32
    %455 = vector.broadcast %cst_291 : f32 to vector<8x128xf32>
    %456 = arith.maximumf %454, %455 : vector<8x128xf32>
    %457 = vector.broadcast %145 : f32 to vector<8x128xf32>
    %458 = arith.mulf %457, %456 : vector<8x128xf32>
    %459 = arith.addf %423, %458 : vector<8x128xf32>
    %460 = vector.broadcast %90 : f32 to vector<8x128xf32>
    %461 = arith.mulf %460, %163 : vector<8x128xf32>
    %462 = vector.broadcast %91 : f32 to vector<8x128xf32>
    %463 = arith.mulf %462, %172 : vector<8x128xf32>
    %464 = arith.addf %461, %463 : vector<8x128xf32>
    %465 = vector.broadcast %92 : f32 to vector<8x128xf32>
    %466 = arith.mulf %465, %181 : vector<8x128xf32>
    %467 = arith.addf %464, %466 : vector<8x128xf32>
    %468 = vector.broadcast %93 : f32 to vector<8x128xf32>
    %469 = arith.mulf %468, %190 : vector<8x128xf32>
    %470 = arith.addf %467, %469 : vector<8x128xf32>
    %471 = vector.broadcast %94 : f32 to vector<8x128xf32>
    %472 = arith.mulf %471, %199 : vector<8x128xf32>
    %473 = arith.addf %470, %472 : vector<8x128xf32>
    %474 = vector.broadcast %95 : f32 to vector<8x128xf32>
    %475 = arith.mulf %474, %208 : vector<8x128xf32>
    %476 = arith.addf %473, %475 : vector<8x128xf32>
    %477 = vector.broadcast %96 : f32 to vector<8x128xf32>
    %478 = arith.mulf %477, %217 : vector<8x128xf32>
    %479 = arith.addf %476, %478 : vector<8x128xf32>
    %480 = vector.broadcast %97 : f32 to vector<8x128xf32>
    %481 = arith.mulf %480, %226 : vector<8x128xf32>
    %482 = arith.addf %479, %481 : vector<8x128xf32>
    %483 = vector.broadcast %98 : f32 to vector<8x128xf32>
    %484 = arith.mulf %483, %235 : vector<8x128xf32>
    %485 = arith.addf %482, %484 : vector<8x128xf32>
    %486 = vector.broadcast %99 : f32 to vector<8x128xf32>
    %487 = arith.mulf %486, %244 : vector<8x128xf32>
    %488 = arith.addf %485, %487 : vector<8x128xf32>
    %489 = vector.broadcast %136 : f32 to vector<8x128xf32>
    %490 = arith.addf %488, %489 : vector<8x128xf32>
    %cst_292 = arith.constant 0.000000e+00 : f32
    %491 = vector.broadcast %cst_292 : f32 to vector<8x128xf32>
    %492 = arith.maximumf %490, %491 : vector<8x128xf32>
    %493 = vector.broadcast %146 : f32 to vector<8x128xf32>
    %494 = arith.mulf %493, %492 : vector<8x128xf32>
    %495 = arith.addf %459, %494 : vector<8x128xf32>
    %496 = vector.broadcast %100 : f32 to vector<8x128xf32>
    %497 = arith.mulf %496, %163 : vector<8x128xf32>
    %498 = vector.broadcast %101 : f32 to vector<8x128xf32>
    %499 = arith.mulf %498, %172 : vector<8x128xf32>
    %500 = arith.addf %497, %499 : vector<8x128xf32>
    %501 = vector.broadcast %102 : f32 to vector<8x128xf32>
    %502 = arith.mulf %501, %181 : vector<8x128xf32>
    %503 = arith.addf %500, %502 : vector<8x128xf32>
    %504 = vector.broadcast %103 : f32 to vector<8x128xf32>
    %505 = arith.mulf %504, %190 : vector<8x128xf32>
    %506 = arith.addf %503, %505 : vector<8x128xf32>
    %507 = vector.broadcast %104 : f32 to vector<8x128xf32>
    %508 = arith.mulf %507, %199 : vector<8x128xf32>
    %509 = arith.addf %506, %508 : vector<8x128xf32>
    %510 = vector.broadcast %105 : f32 to vector<8x128xf32>
    %511 = arith.mulf %510, %208 : vector<8x128xf32>
    %512 = arith.addf %509, %511 : vector<8x128xf32>
    %513 = vector.broadcast %106 : f32 to vector<8x128xf32>
    %514 = arith.mulf %513, %217 : vector<8x128xf32>
    %515 = arith.addf %512, %514 : vector<8x128xf32>
    %516 = vector.broadcast %107 : f32 to vector<8x128xf32>
    %517 = arith.mulf %516, %226 : vector<8x128xf32>
    %518 = arith.addf %515, %517 : vector<8x128xf32>
    %519 = vector.broadcast %108 : f32 to vector<8x128xf32>
    %520 = arith.mulf %519, %235 : vector<8x128xf32>
    %521 = arith.addf %518, %520 : vector<8x128xf32>
    %522 = vector.broadcast %109 : f32 to vector<8x128xf32>
    %523 = arith.mulf %522, %244 : vector<8x128xf32>
    %524 = arith.addf %521, %523 : vector<8x128xf32>
    %525 = vector.broadcast %137 : f32 to vector<8x128xf32>
    %526 = arith.addf %524, %525 : vector<8x128xf32>
    %cst_293 = arith.constant 0.000000e+00 : f32
    %527 = vector.broadcast %cst_293 : f32 to vector<8x128xf32>
    %528 = arith.maximumf %526, %527 : vector<8x128xf32>
    %529 = vector.broadcast %147 : f32 to vector<8x128xf32>
    %530 = arith.mulf %529, %528 : vector<8x128xf32>
    %531 = arith.addf %495, %530 : vector<8x128xf32>
    %532 = vector.broadcast %110 : f32 to vector<8x128xf32>
    %533 = arith.mulf %532, %163 : vector<8x128xf32>
    %534 = vector.broadcast %111 : f32 to vector<8x128xf32>
    %535 = arith.mulf %534, %172 : vector<8x128xf32>
    %536 = arith.addf %533, %535 : vector<8x128xf32>
    %537 = vector.broadcast %112 : f32 to vector<8x128xf32>
    %538 = arith.mulf %537, %181 : vector<8x128xf32>
    %539 = arith.addf %536, %538 : vector<8x128xf32>
    %540 = vector.broadcast %113 : f32 to vector<8x128xf32>
    %541 = arith.mulf %540, %190 : vector<8x128xf32>
    %542 = arith.addf %539, %541 : vector<8x128xf32>
    %543 = vector.broadcast %114 : f32 to vector<8x128xf32>
    %544 = arith.mulf %543, %199 : vector<8x128xf32>
    %545 = arith.addf %542, %544 : vector<8x128xf32>
    %546 = vector.broadcast %115 : f32 to vector<8x128xf32>
    %547 = arith.mulf %546, %208 : vector<8x128xf32>
    %548 = arith.addf %545, %547 : vector<8x128xf32>
    %549 = vector.broadcast %116 : f32 to vector<8x128xf32>
    %550 = arith.mulf %549, %217 : vector<8x128xf32>
    %551 = arith.addf %548, %550 : vector<8x128xf32>
    %552 = vector.broadcast %117 : f32 to vector<8x128xf32>
    %553 = arith.mulf %552, %226 : vector<8x128xf32>
    %554 = arith.addf %551, %553 : vector<8x128xf32>
    %555 = vector.broadcast %118 : f32 to vector<8x128xf32>
    %556 = arith.mulf %555, %235 : vector<8x128xf32>
    %557 = arith.addf %554, %556 : vector<8x128xf32>
    %558 = vector.broadcast %119 : f32 to vector<8x128xf32>
    %559 = arith.mulf %558, %244 : vector<8x128xf32>
    %560 = arith.addf %557, %559 : vector<8x128xf32>
    %561 = vector.broadcast %138 : f32 to vector<8x128xf32>
    %562 = arith.addf %560, %561 : vector<8x128xf32>
    %cst_294 = arith.constant 0.000000e+00 : f32
    %563 = vector.broadcast %cst_294 : f32 to vector<8x128xf32>
    %564 = arith.maximumf %562, %563 : vector<8x128xf32>
    %565 = vector.broadcast %148 : f32 to vector<8x128xf32>
    %566 = arith.mulf %565, %564 : vector<8x128xf32>
    %567 = arith.addf %531, %566 : vector<8x128xf32>
    %568 = vector.broadcast %120 : f32 to vector<8x128xf32>
    %569 = arith.mulf %568, %163 : vector<8x128xf32>
    %570 = vector.broadcast %121 : f32 to vector<8x128xf32>
    %571 = arith.mulf %570, %172 : vector<8x128xf32>
    %572 = arith.addf %569, %571 : vector<8x128xf32>
    %573 = vector.broadcast %122 : f32 to vector<8x128xf32>
    %574 = arith.mulf %573, %181 : vector<8x128xf32>
    %575 = arith.addf %572, %574 : vector<8x128xf32>
    %576 = vector.broadcast %123 : f32 to vector<8x128xf32>
    %577 = arith.mulf %576, %190 : vector<8x128xf32>
    %578 = arith.addf %575, %577 : vector<8x128xf32>
    %579 = vector.broadcast %124 : f32 to vector<8x128xf32>
    %580 = arith.mulf %579, %199 : vector<8x128xf32>
    %581 = arith.addf %578, %580 : vector<8x128xf32>
    %582 = vector.broadcast %125 : f32 to vector<8x128xf32>
    %583 = arith.mulf %582, %208 : vector<8x128xf32>
    %584 = arith.addf %581, %583 : vector<8x128xf32>
    %585 = vector.broadcast %126 : f32 to vector<8x128xf32>
    %586 = arith.mulf %585, %217 : vector<8x128xf32>
    %587 = arith.addf %584, %586 : vector<8x128xf32>
    %588 = vector.broadcast %127 : f32 to vector<8x128xf32>
    %589 = arith.mulf %588, %226 : vector<8x128xf32>
    %590 = arith.addf %587, %589 : vector<8x128xf32>
    %591 = vector.broadcast %128 : f32 to vector<8x128xf32>
    %592 = arith.mulf %591, %235 : vector<8x128xf32>
    %593 = arith.addf %590, %592 : vector<8x128xf32>
    %594 = vector.broadcast %129 : f32 to vector<8x128xf32>
    %595 = arith.mulf %594, %244 : vector<8x128xf32>
    %596 = arith.addf %593, %595 : vector<8x128xf32>
    %597 = vector.broadcast %139 : f32 to vector<8x128xf32>
    %598 = arith.addf %596, %597 : vector<8x128xf32>
    %cst_295 = arith.constant 0.000000e+00 : f32
    %599 = vector.broadcast %cst_295 : f32 to vector<8x128xf32>
    %600 = arith.maximumf %598, %599 : vector<8x128xf32>
    %601 = vector.broadcast %149 : f32 to vector<8x128xf32>
    %602 = arith.mulf %601, %600 : vector<8x128xf32>
    %603 = arith.addf %567, %602 : vector<8x128xf32>
    %604 = vector.broadcast %150 : f32 to vector<8x128xf32>
    %605 = arith.addf %603, %604 : vector<8x128xf32>
    %c0_296 = arith.constant 0 : index
    %c0_297 = arith.constant 0 : index
    %c0_298 = arith.constant 0 : index
    %606 = vector.load %arg8[%c0_296, %c0_297, %c0_298] : memref<1x8x128xf32, #tpu.memory_space<vmem>>, vector<1x8x128xf32>
    %607 = vector.shape_cast %606 : vector<1x8x128xf32> to vector<8x128xf32>
    %608 = vector.shape_cast %605 : vector<8x128xf32> to vector<1x8x128xf32>
    tpu.vector_store %arg8[%c0_296, %c0_297, %c0_298], %608 {strides = array<i32>} : memref<1x8x128xf32, #tpu.memory_space<vmem>>, vector<1x8x128xf32>,
    return
  }
  func.func @transform_0(%arg0: i32) -> (i32, i32) {
    %c0_i32 = arith.constant 0 : i32
    %c0_i32_0 = arith.constant 0 : i32
    %c0_i32_1 = arith.constant 0 : i32
    return %c0_i32, %c0_i32_0 : i32, i32
  }
  func.func @transform_1(%arg0: i32) -> i32 {
    %c0_i32 = arith.constant 0 : i32
    %c0_i32_0 = arith.constant 0 : i32
    return %c0_i32 : i32
  }
  func.func @transform_2(%arg0: i32) -> (i32, i32) {
    %c0_i32 = arith.constant 0 : i32
    %c0_i32_0 = arith.constant 0 : i32
    %c0_i32_1 = arith.constant 0 : i32
    return %c0_i32, %c0_i32_0 : i32, i32
  }
  func.func @transform_3(%arg0: i32) -> i32 {
    %c0_i32 = arith.constant 0 : i32
    %c0_i32_0 = arith.constant 0 : i32
    return %c0_i32 : i32
  }
  func.func @transform_4(%arg0: i32) -> (i32, i32) {
    %c0_i32 = arith.constant 0 : i32
    %c0_i32_0 = arith.constant 0 : i32
    %c0_i32_1 = arith.constant 0 : i32
    return %c0_i32, %c0_i32_0 : i32, i32
  }
  func.func @transform_5(%arg0: i32) -> i32 {
    %c0_i32 = arith.constant 0 : i32
    %c0_i32_0 = arith.constant 0 : i32
    return %c0_i32 : i32
  }
  func.func @transform_6(%arg0: i32) -> (i32, i32, i32) {
    %c0_i32 = arith.constant 0 : i32
    %c0_i32_0 = arith.constant 0 : i32
    %c0_i32_1 = arith.constant 0 : i32
    return %c0_i32, %arg0, %c0_i32_0 : i32, i32, i32
  }
  func.func @transform_7(%arg0: i32) -> (i32, i32, i32) {
    %c0_i32 = arith.constant 0 : i32
    %c0_i32_0 = arith.constant 0 : i32
    %c0_i32_1 = arith.constant 0 : i32
    return %c0_i32, %arg0, %c0_i32_0 : i32, i32, i32
  }
}

</mosaic_0001>

<llo_original>
// kernel: tpu_custom_call.1
$region0: #{tpu_custom_call.1}
  #allocation0 [shape = 'u32[]', space=smem, size = 0x4, offset = 0x4, fixed_abs, tag = 'smem constant byte address 0x4 - core index']
  #allocation1 [shape = 'u32[72,128]{1,0:T(1,128)}', space=vmem, size = 0x9000, scoped, tag = 'internal scratch']
  #allocation2 [shape = 'f32[1]{0:T(128)S(6)}', space=smem, size = 0x200, scoped, tag = 'scoped memory for tpu_custom_call.1']
  %s0 = inlined_call_operand.vmem [shape: f32[10,2], index: 0, kind: input, shape index: {}]
  %s1 = inlined_call_operand.vmem [shape: f32[10], index: 1, kind: input, shape index: {}]
  %s2 = inlined_call_operand.vmem [shape: f32[10,10], index: 2, kind: input, shape index: {}]
  %s3 = inlined_call_operand.vmem [shape: f32[10], index: 3, kind: input, shape index: {}]
  %s4 = inlined_call_operand.vmem [shape: f32[1,10], index: 4, kind: input, shape index: {}]
  %s5 = inlined_call_operand.<no memory space> [shape: f32[1], index: 5, kind: input, shape index: {}]
  %s6 = inlined_call_operand.hbm [shape: f32[2,8,128], index: 6, kind: input, shape index: {}]
  %s7 = inlined_call_operand.hbm [shape: f32[1,8,128], index: 7, kind: output, shape index: {}]
  %s8 = sld [smem:[#allocation0]]
  $region62: #{tpu_custom_call.1} parent=0
    _
  %s10 = ssub.s32 1, %s8
  %s11 = scalar_select 0, %s10, %s8
  %12 = sst [smem:[#allocation2]] %s5
  $region1: #{tpu_custom_call.1} parent=0
    #allocation3 [shape = 'u8[8192]{0}', space=smem, size = 0x2000, scoped, tag = 'input window, operand 0, single buffered']
    #allocation4 [shape = 's32[1]{0}', space=sflag, size = 0x4, scoped, tag = 'scoped memory for tpu_custom_call.1']
    #allocation5 [shape = 's32[1]{0}', space=sflag, size = 0x4, scoped, tag = 'scoped memory for tpu_custom_call.1']
    #allocation6 [shape = 's32[1]{0}', space=sflag, size = 0x4, scoped, tag = 'scoped memory for tpu_custom_call.1']
    #allocation7 [shape = 'u8[512]{0}', space=smem, size = 0x200, scoped, tag = 'input window, operand 1, single buffered']
    #allocation8 [shape = 's32[1]{0}', space=sflag, size = 0x4, scoped, tag = 'scoped memory for tpu_custom_call.1']
    #allocation9 [shape = 'u8[8192]{0}', space=smem, size = 0x2000, scoped, tag = 'input window, operand 2, single buffered']
    #allocation10 [shape = 'u8[512]{0}', space=smem, size = 0x200, scoped, tag = 'input window, operand 3, single buffered']
    #allocation11 [shape = 's32[1]{0}', space=sflag, size = 0x4, scoped, tag = 'scoped memory for tpu_custom_call.1']
    #allocation12 [shape = 'u8[512]{0}', space=smem, size = 0x200, scoped, tag = 'input window, operand 4, single buffered']
    #allocation13 [shape = 'u8[8192]{0}', space=vmem, size = 0x2000, scoped, tag = 'input window, operand 6, single buffered']
    #allocation14 [shape = 'u8[4096]{0}', space=vmem, size = 0x1000, scoped, tag = 'output window, operand 0, single buffered']
    %13 = vsyncpa [#allocation6], 0
    %14 = vsyncpa [#allocation8], 0
    %15 = vsyncpa [#allocation11], 0
    %16 = vsyncpa [#allocation4], 0
    %17 = vsyncpa [#allocation5], 0
    // Predicated region
    $region2: #{tpu_custom_call.1} parent=1 // pred_check
      _
    $region3: #{tpu_custom_call.1} parent=1 // pred_check_branch
      %19 = sbr.rel (0) target = $region5
    $region4: #{tpu_custom_call.1} parent=1 // pred_region
      %21 = vsyncadd [#allocation6], 0
      %s22 = sshll.u32 %s0, 4
      %s23 = int_to_ptr.vmem [resolvable:$true] %s22
      %28 = dma.vmem_to_smem %s23, 256, [#allocation3], [#allocation6], 128, 128, 8
    $region5: #{tpu_custom_call.1} parent=1 // pred_fallthru
      _
    // Predicated region
    $region6: #{tpu_custom_call.1} parent=1 // pred_check
      _
    $region7: #{tpu_custom_call.1} parent=1 // pred_check_branch
      %30 = sbr.rel (0) target = $region9
    $region8: #{tpu_custom_call.1} parent=1 // pred_region
      %32 = vsyncadd [#allocation8], 0
      %s34 = sshll.u32 %s1, 4
      %s35 = int_to_ptr.vmem [resolvable:$true] %s34
      %37 = dma.vmem_to_smem %s35, 16, [#allocation7], [#allocation8]
    $region9: #{tpu_custom_call.1} parent=1 // pred_fallthru
      _
    // Predicated region
    $region10: #{tpu_custom_call.1} parent=1 // pred_check
      _
    $region11: #{tpu_custom_call.1} parent=1 // pred_check_branch
      %39 = sbr.rel (0) target = $region13
    $region12: #{tpu_custom_call.1} parent=1 // pred_region
      %41 = vsyncadd [#allocation8], 0
      %s42 = sshll.u32 %s2, 4
      %s43 = int_to_ptr.vmem [resolvable:$true] %s42
      %48 = dma.vmem_to_smem %s43, 256, [#allocation9], [#allocation8], 128, 128, 8
    $region13: #{tpu_custom_call.1} parent=1 // pred_fallthru
      _
    // Predicated region
    $region14: #{tpu_custom_call.1} parent=1 // pred_check
      _
    $region15: #{tpu_custom_call.1} parent=1 // pred_check_branch
      %50 = sbr.rel (0) target = $region17
    $region16: #{tpu_custom_call.1} parent=1 // pred_region
      %52 = vsyncadd [#allocation11], 0
      %s54 = sshll.u32 %s3, 4
      %s55 = int_to_ptr.vmem [resolvable:$true] %s54
      %57 = dma.vmem_to_smem %s55, 16, [#allocation10], [#allocation11]
    $region17: #{tpu_custom_call.1} parent=1 // pred_fallthru
      _
    // Predicated region
    $region18: #{tpu_custom_call.1} parent=1 // pred_check
      _
    $region19: #{tpu_custom_call.1} parent=1 // pred_check_branch
      %59 = sbr.rel (0) target = $region21
    $region20: #{tpu_custom_call.1} parent=1 // pred_region
      %61 = vsyncadd [#allocation11], 0
      %s63 = sshll.u32 %s4, 4
      %s64 = int_to_ptr.vmem [resolvable:$true] %s63
      %66 = dma.vmem_to_smem %s64, 16, [#allocation12], [#allocation11]
    $region21: #{tpu_custom_call.1} parent=1 // pred_fallthru
      _
    // Predicated region
    $region22: #{tpu_custom_call.1} parent=1 // pred_check
      _
    $region23: #{tpu_custom_call.1} parent=1 // pred_check_branch
      %68 = sbr.rel (0) target = $region25
    $region24: #{tpu_custom_call.1} parent=1 // pred_region
      _
    $region25: #{tpu_custom_call.1} parent=1 // pred_fallthru
      _
    // Predicated region
    $region26: #{tpu_custom_call.1} parent=1 // pred_check
      _
    $region27: #{tpu_custom_call.1} parent=1 // pred_check_branch
      %70 = sbr.rel (0) target = $region29
    $region28: #{tpu_custom_call.1} parent=1 // pred_region
      %72 = vsyncadd [#allocation4], 0
      %s73 = sshll.u32 %s6, 4
      %s74 = int_to_ptr.hbm [resolvable:$true] %s73
      %s75 = sshll.u32 [#allocation13], 4
      %s76 = int_to_ptr.vmem [resolvable:$true] %s75
      %81 = dma.hbm_to_vmem [thread:$0]  %s74, 256, %s76, [#allocation4], 128, 128, 8
    $region29: #{tpu_custom_call.1} parent=1 // pred_fallthru
      _
    // Predicated region
    $region30: #{tpu_custom_call.1} parent=1 // pred_check
      _
    $region31: #{tpu_custom_call.1} parent=1 // pred_check_branch
      %83 = sbr.rel (0) target = $region33
    $region32: #{tpu_custom_call.1} parent=1 // pred_region
      %85 = dma.done [#allocation6], 256
    $region33: #{tpu_custom_call.1} parent=1 // pred_fallthru
      _
    // Predicated region
    $region34: #{tpu_custom_call.1} parent=1 // pred_check
      _
    $region35: #{tpu_custom_call.1} parent=1 // pred_check_branch
      %87 = sbr.rel (0) target = $region37
    $region36: #{tpu_custom_call.1} parent=1 // pred_region
      %89 = dma.done [#allocation8], 16
    $region37: #{tpu_custom_call.1} parent=1 // pred_fallthru
      _
    // Predicated region
    $region38: #{tpu_custom_call.1} parent=1 // pred_check
      _
    $region39: #{tpu_custom_call.1} parent=1 // pred_check_branch
      %91 = sbr.rel (0) target = $region41
    $region40: #{tpu_custom_call.1} parent=1 // pred_region
      %93 = dma.done [#allocation8], 256
    $region41: #{tpu_custom_call.1} parent=1 // pred_fallthru
      _
    // Predicated region
    $region42: #{tpu_custom_call.1} parent=1 // pred_check
      _
    $region43: #{tpu_custom_call.1} parent=1 // pred_check_branch
      %95 = sbr.rel (0) target = $region45
    $region44: #{tpu_custom_call.1} parent=1 // pred_region
      %97 = dma.done [#allocation11], 16
    $region45: #{tpu_custom_call.1} parent=1 // pred_fallthru
      _
    // Predicated region
    $region46: #{tpu_custom_call.1} parent=1 // pred_check
      _
    $region47: #{tpu_custom_call.1} parent=1 // pred_check_branch
      %99 = sbr.rel (0) target = $region49
    $region48: #{tpu_custom_call.1} parent=1 // pred_region
      %101 = dma.done [#allocation11], 16
    $region49: #{tpu_custom_call.1} parent=1 // pred_fallthru
      _
    // Predicated region
    $region50: #{tpu_custom_call.1} parent=1 // pred_check
      _
    $region51: #{tpu_custom_call.1} parent=1 // pred_check_branch
      %103 = sbr.rel (0) target = $region53
    $region52: #{tpu_custom_call.1} parent=1 // pred_region
      %105 = dma.done [#allocation4], 256
    $region53: #{tpu_custom_call.1} parent=1 // pred_fallthru
      _
    %106 = sfence
    %s107 = sld [smem:[#allocation3]]
    %s108 = sld [smem:[#allocation3 + $0x1]]
    %s109 = sld [smem:[#allocation3 + $0x80]]
    %s110 = sld [smem:[#allocation3 + $0x81]]
    %s111 = sld [smem:[#allocation3 + $0x100]]
    %s112 = sld [smem:[#allocation3 + $0x101]]
    %s113 = sld [smem:[#allocation3 + $0x180]]
    %s114 = sld [smem:[#allocation3 + $0x181]]
    %s115 = sld [smem:[#allocation3 + $0x200]]
    %s116 = sld [smem:[#allocation3 + $0x201]]
    %s117 = sld [smem:[#allocation3 + $0x280]]
    %s118 = sld [smem:[#allocation3 + $0x281]]
    %s119 = sld [smem:[#allocation3 + $0x300]]
    %s120 = sld [smem:[#allocation3 + $0x301]]
    %s121 = sld [smem:[#allocation3 + $0x380]]
    %s122 = sld [smem:[#allocation3 + $0x381]]
    %s123 = sld [smem:[#allocation3 + $0x400]]
    %s124 = sld [smem:[#allocation3 + $0x401]]
    %s125 = sld [smem:[#allocation3 + $0x480]]
    %s126 = sld [smem:[#allocation3 + $0x481]]
    %s127 = sld [smem:[#allocation7]]
    %s128 = sld [smem:[#allocation7 + $0x1]]
    %s129 = sld [smem:[#allocation7 + $0x2]]
    %s130 = sld [smem:[#allocation7 + $0x3]]
    %s131 = sld [smem:[#allocation7 + $0x4]]
    %s132 = sld [smem:[#allocation7 + $0x5]]
    %s133 = sld [smem:[#allocation7 + $0x6]]
    %s134 = sld [smem:[#allocation7 + $0x7]]
    %s135 = sld [smem:[#allocation7 + $0x8]]
    %s136 = sld [smem:[#allocation7 + $0x9]]
    %s137 = sld [smem:[#allocation9]]
    %s138 = sld [smem:[#allocation9 + $0x1]]
    %s139 = sld [smem:[#allocation9 + $0x2]]
    %s140 = sld [smem:[#allocation9 + $0x3]]
    %s141 = sld [smem:[#allocation9 + $0x4]]
    %s142 = sld [smem:[#allocation9 + $0x5]]
    %s143 = sld [smem:[#allocation9 + $0x6]]
    %s144 = sld [smem:[#allocation9 + $0x7]]
    %s145 = sld [smem:[#allocation9 + $0x8]]
    %s146 = sld [smem:[#allocation9 + $0x9]]
    %s147 = sld [smem:[#allocation9 + $0x80]]
    %s148 = sld [smem:[#allocation9 + $0x81]]
    %s149 = sld [smem:[#allocation9 + $0x82]]
    %s150 = sld [smem:[#allocation9 + $0x83]]
    %s151 = sld [smem:[#allocation9 + $0x84]]
    %s152 = sld [smem:[#allocation9 + $0x85]]
    %s153 = sld [smem:[#allocation9 + $0x86]]
    %s154 = sld [smem:[#allocation9 + $0x87]]
    %s155 = sld [smem:[#allocation9 + $0x88]]
    %s156 = sld [smem:[#allocation9 + $0x89]]
    %s157 = sld [smem:[#allocation9 + $0x100]]
    %s158 = sld [smem:[#allocation9 + $0x101]]
    %s159 = sld [smem:[#allocation9 + $0x102]]
    %s160 = sld [smem:[#allocation9 + $0x103]]
    %s161 = sld [smem:[#allocation9 + $0x104]]
    %s162 = sld [smem:[#allocation9 + $0x105]]
    %s163 = sld [smem:[#allocation9 + $0x106]]
    %s164 = sld [smem:[#allocation9 + $0x107]]
    %s165 = sld [smem:[#allocation9 + $0x108]]
    %s166 = sld [smem:[#allocation9 + $0x109]]
    %s167 = sld [smem:[#allocation9 + $0x180]]
    %s168 = sld [smem:[#allocation9 + $0x181]]
    %s169 = sld [smem:[#allocation9 + $0x182]]
    %s170 = sld [smem:[#allocation9 + $0x183]]
    %s171 = sld [smem:[#allocation9 + $0x184]]
    %s172 = sld [smem:[#allocation9 + $0x185]]
    %s173 = sld [smem:[#allocation9 + $0x186]]
    %s174 = sld [smem:[#allocation9 + $0x187]]
    %s175 = sld [smem:[#allocation9 + $0x188]]
    %s176 = sld [smem:[#allocation9 + $0x189]]
    %s177 = sld [smem:[#allocation9 + $0x200]]
    %s178 = sld [smem:[#allocation9 + $0x201]]
    %s179 = sld [smem:[#allocation9 + $0x202]]
    %s180 = sld [smem:[#allocation9 + $0x203]]
    %s181 = sld [smem:[#allocation9 + $0x204]]
    %s182 = sld [smem:[#allocation9 + $0x205]]
    %s183 = sld [smem:[#allocation9 + $0x206]]
    %s184 = sld [smem:[#allocation9 + $0x207]]
    %s185 = sld [smem:[#allocation9 + $0x208]]
    %s186 = sld [smem:[#allocation9 + $0x209]]
    %s187 = sld [smem:[#allocation9 + $0x280]]
    %s188 = sld [smem:[#allocation9 + $0x281]]
    %s189 = sld [smem:[#allocation9 + $0x282]]
    %s190 = sld [smem:[#allocation9 + $0x283]]
    %s191 = sld [smem:[#allocation9 + $0x284]]
    %s192 = sld [smem:[#allocation9 + $0x285]]
    %s193 = sld [smem:[#allocation9 + $0x286]]
    %s194 = sld [smem:[#allocation9 + $0x287]]
    %s195 = sld [smem:[#allocation9 + $0x288]]
    %s196 = sld [smem:[#allocation9 + $0x289]]
    %s197 = sld [smem:[#allocation9 + $0x300]]
    %s198 = sld [smem:[#allocation9 + $0x301]]
    %s199 = sld [smem:[#allocation9 + $0x302]]
    %s200 = sld [smem:[#allocation9 + $0x303]]
    %s201 = sld [smem:[#allocation9 + $0x304]]
    %s202 = sld [smem:[#allocation9 + $0x305]]
    %s203 = sld [smem:[#allocation9 + $0x306]]
    %s204 = sld [smem:[#allocation9 + $0x307]]
    %s205 = sld [smem:[#allocation9 + $0x308]]
    %s206 = sld [smem:[#allocation9 + $0x309]]
    %s207 = sld [smem:[#allocation9 + $0x380]]
    %s208 = sld [smem:[#allocation9 + $0x381]]
    %s209 = sld [smem:[#allocation9 + $0x382]]
    %s210 = sld [smem:[#allocation9 + $0x383]]
    %s211 = sld [smem:[#allocation9 + $0x384]]
    %s212 = sld [smem:[#allocation9 + $0x385]]
    %s213 = sld [smem:[#allocation9 + $0x386]]
    %s214 = sld [smem:[#allocation9 + $0x387]]
    %s215 = sld [smem:[#allocation9 + $0x388]]
    %s216 = sld [smem:[#allocation9 + $0x389]]
    %s217 = sld [smem:[#allocation9 + $0x400]]
    %s218 = sld [smem:[#allocation9 + $0x401]]
    %s219 = sld [smem:[#allocation9 + $0x402]]
    %s220 = sld [smem:[#allocation9 + $0x403]]
    %s221 = sld [smem:[#allocation9 + $0x404]]
    %s222 = sld [smem:[#allocation9 + $0x405]]
    %s223 = sld [smem:[#allocation9 + $0x406]]
    %s224 = sld [smem:[#allocation9 + $0x407]]
    %s225 = sld [smem:[#allocation9 + $0x408]]
    %s226 = sld [smem:[#allocation9 + $0x409]]
    %s227 = sld [smem:[#allocation9 + $0x480]]
    %s228 = sld [smem:[#allocation9 + $0x481]]
    %s229 = sld [smem:[#allocation9 + $0x482]]
    %s230 = sld [smem:[#allocation9 + $0x483]]
    %s231 = sld [smem:[#allocation9 + $0x484]]
    %s232 = sld [smem:[#allocation9 + $0x485]]
    %s233 = sld [smem:[#allocation9 + $0x486]]
    %s234 = sld [smem:[#allocation9 + $0x487]]
    %s235 = sld [smem:[#allocation9 + $0x488]]
    %s236 = sld [smem:[#allocation9 + $0x489]]
    %s237 = sld [smem:[#allocation10]]
    %s238 = sld [smem:[#allocation10 + $0x1]]
    %s239 = sld [smem:[#allocation10 + $0x2]]
    %s240 = sld [smem:[#allocation10 + $0x3]]
    %s241 = sld [smem:[#allocation10 + $0x4]]
    %s242 = sld [smem:[#allocation10 + $0x5]]
    %s243 = sld [smem:[#allocation10 + $0x6]]
    %s244 = sld [smem:[#allocation10 + $0x7]]
    %s245 = sld [smem:[#allocation10 + $0x8]]
    %s246 = sld [smem:[#allocation10 + $0x9]]
    %s247 = sld [smem:[#allocation12]]
    %s248 = sld [smem:[#allocation12 + $0x1]]
    %s249 = sld [smem:[#allocation12 + $0x2]]
    %s250 = sld [smem:[#allocation12 + $0x3]]
    %s251 = sld [smem:[#allocation12 + $0x4]]
    %s252 = sld [smem:[#allocation12 + $0x5]]
    %s253 = sld [smem:[#allocation12 + $0x6]]
    %s254 = sld [smem:[#allocation12 + $0x7]]
    %s255 = sld [smem:[#allocation12 + $0x8]]
    %s256 = sld [smem:[#allocation12 + $0x9]]
    %s257 = sld [smem:[#allocation2]]
    %v258 = vld [vmem:[#allocation13] sm:$0xff]
    %s259 = scalar_lea.vmem [#allocation13], 8
    %v260 = vld [vmem:[%s259] sm:$0xff]
    %v261 = vstv %s107
    %v262 = vmul.f32 %v261, %v258
    %v263 = vstv %s108
    %v264 = vmul.f32 %v263, %v260
    %v265 = vadd.f32 %v262, %v264
    %v266 = vstv %s127
    %v267 = vadd.f32 %v265, %v266
    %v268 = vmax.f32 %v267, 0.0
    %v269 = vstv %s109
    %v270 = vmul.f32 %v269, %v258
    %v271 = vstv %s110
    %v272 = vmul.f32 %v271, %v260
    %v273 = vadd.f32 %v270, %v272
    %v274 = vstv %s128
    %v275 = vadd.f32 %v273, %v274
    %v276 = vmax.f32 %v275, 0.0
    %v277 = vstv %s111
    %v278 = vmul.f32 %v277, %v258
    %v279 = vstv %s112
    %v280 = vmul.f32 %v279, %v260
    %v281 = vadd.f32 %v278, %v280
    %v282 = vstv %s129
    %v283 = vadd.f32 %v281, %v282
    %v284 = vmax.f32 %v283, 0.0
    %v285 = vstv %s113
    %v286 = vmul.f32 %v285, %v258
    %v287 = vstv %s114
    %v288 = vmul.f32 %v287, %v260
    %v289 = vadd.f32 %v286, %v288
    %v290 = vstv %s130
    %v291 = vadd.f32 %v289, %v290
    %v292 = vmax.f32 %v291, 0.0
    %v293 = vstv %s115
    %v294 = vmul.f32 %v293, %v258
    %v295 = vstv %s116
    %v296 = vmul.f32 %v295, %v260
    %v297 = vadd.f32 %v294, %v296
    %v298 = vstv %s131
    %v299 = vadd.f32 %v297, %v298
    %v300 = vmax.f32 %v299, 0.0
    %v301 = vstv %s117
    %v302 = vmul.f32 %v301, %v258
    %v303 = vstv %s118
    %v304 = vmul.f32 %v303, %v260
    %v305 = vadd.f32 %v302, %v304
    %v306 = vstv %s132
    %v307 = vadd.f32 %v305, %v306
    %v308 = vmax.f32 %v307, 0.0
    %v309 = vstv %s119
    %v310 = vmul.f32 %v309, %v258
    %v311 = vstv %s120
    %v312 = vmul.f32 %v311, %v260
    %v313 = vadd.f32 %v310, %v312
    %v314 = vstv %s133
    %v315 = vadd.f32 %v313, %v314
    %v316 = vmax.f32 %v315, 0.0
    %v317 = vstv %s121
    %v318 = vmul.f32 %v317, %v258
    %v319 = vstv %s122
    %v320 = vmul.f32 %v319, %v260
    %v321 = vadd.f32 %v318, %v320
    %v322 = vstv %s134
    %v323 = vadd.f32 %v321, %v322
    %v324 = vmax.f32 %v323, 0.0
    %v325 = vstv %s123
    %v326 = vmul.f32 %v325, %v258
    %v327 = vstv %s124
    %v328 = vmul.f32 %v327, %v260
    %v329 = vadd.f32 %v326, %v328
    %v330 = vstv %s135
    %v331 = vadd.f32 %v329, %v330
    %v332 = vmax.f32 %v331, 0.0
    %v333 = vstv %s125
    %v334 = vmul.f32 %v333, %v258
    %v335 = vstv %s126
    %v336 = vmul.f32 %v335, %v260
    %v337 = vadd.f32 %v334, %v336
    %v338 = vstv %s136
    %v339 = vadd.f32 %v337, %v338
    %v340 = vmax.f32 %v339, 0.0
    %v341 = vstv %s137
    %v342 = vmul.f32 %v341, %v268
    %v343 = vstv %s138
    %v344 = vmul.f32 %v343, %v276
    %v345 = vadd.f32 %v342, %v344
    %v346 = vstv %s139
    %v347 = vmul.f32 %v346, %v284
    %v348 = vadd.f32 %v345, %v347
    %v349 = vstv %s140
    %v350 = vmul.f32 %v349, %v292
    %v351 = vadd.f32 %v348, %v350
    %v352 = vstv %s141
    %v353 = vmul.f32 %v352, %v300
    %v354 = vadd.f32 %v351, %v353
    %v355 = vstv %s142
    %v356 = vmul.f32 %v355, %v308
    %v357 = vadd.f32 %v354, %v356
    %v358 = vstv %s143
    %v359 = vmul.f32 %v358, %v316
    %v360 = vadd.f32 %v357, %v359
    %v361 = vstv %s144
    %v362 = vmul.f32 %v361, %v324
    %v363 = vadd.f32 %v360, %v362
    %v364 = vstv %s145
    %v365 = vmul.f32 %v364, %v332
    %v366 = vadd.f32 %v363, %v365
    %v367 = vstv %s146
    %v368 = vmul.f32 %v367, %v340
    %v369 = vadd.f32 %v366, %v368
    %v370 = vstv %s237
    %v371 = vadd.f32 %v369, %v370
    %v372 = vmax.f32 %v371, 0.0
    %v373 = vstv %s247
    %v374 = vmul.f32 %v373, %v372
    %v375 = vstv %s147
    %v376 = vmul.f32 %v375, %v268
    %v377 = vstv %s148
    %v378 = vmul.f32 %v377, %v276
    %v379 = vadd.f32 %v376, %v378
    %v380 = vstv %s149
    %v381 = vmul.f32 %v380, %v284
    %v382 = vadd.f32 %v379, %v381
    %v383 = vstv %s150
    %v384 = vmul.f32 %v383, %v292
    %v385 = vadd.f32 %v382, %v384
    %v386 = vstv %s151
    %v387 = vmul.f32 %v386, %v300
    %v388 = vadd.f32 %v385, %v387
    %v389 = vstv %s152
    %v390 = vmul.f32 %v389, %v308
    %v391 = vadd.f32 %v388, %v390
    %v392 = vstv %s153
    %v393 = vmul.f32 %v392, %v316
    %v394 = vadd.f32 %v391, %v393
    %v395 = vstv %s154
    %v396 = vmul.f32 %v395, %v324
    %v397 = vadd.f32 %v394, %v396
    %v398 = vstv %s155
    %v399 = vmul.f32 %v398, %v332
    %v400 = vadd.f32 %v397, %v399
    %v401 = vstv %s156
    %v402 = vmul.f32 %v401, %v340
    %v403 = vadd.f32 %v400, %v402
    %v404 = vstv %s238
    %v405 = vadd.f32 %v403, %v404
    %v406 = vmax.f32 %v405, 0.0
    %v407 = vstv %s248
    %v408 = vmul.f32 %v407, %v406
    %v409 = vadd.f32 %v374, %v408
    %v410 = vstv %s157
    %v411 = vmul.f32 %v410, %v268
    %v412 = vstv %s158
    %v413 = vmul.f32 %v412, %v276
    %v414 = vadd.f32 %v411, %v413
    %v415 = vstv %s159
    %v416 = vmul.f32 %v415, %v284
    %v417 = vadd.f32 %v414, %v416
    %v418 = vstv %s160
    %v419 = vmul.f32 %v418, %v292
    %v420 = vadd.f32 %v417, %v419
    %v421 = vstv %s161
    %v422 = vmul.f32 %v421, %v300
    %v423 = vadd.f32 %v420, %v422
    %v424 = vstv %s162
    %v425 = vmul.f32 %v424, %v308
    %v426 = vadd.f32 %v423, %v425
    %v427 = vstv %s163
    %v428 = vmul.f32 %v427, %v316
    %v429 = vadd.f32 %v426, %v428
    %v430 = vstv %s164
    %v431 = vmul.f32 %v430, %v324
    %v432 = vadd.f32 %v429, %v431
    %v433 = vstv %s165
    %v434 = vmul.f32 %v433, %v332
    %v435 = vadd.f32 %v432, %v434
    %v436 = vstv %s166
    %v437 = vmul.f32 %v436, %v340
    %v438 = vadd.f32 %v435, %v437
    %v439 = vstv %s239
    %v440 = vadd.f32 %v438, %v439
    %v441 = vmax.f32 %v440, 0.0
    %v442 = vstv %s249
    %v443 = vmul.f32 %v442, %v441
    %v444 = vadd.f32 %v409, %v443
    %v445 = vstv %s167
    %v446 = vmul.f32 %v445, %v268
    %v447 = vstv %s168
    %v448 = vmul.f32 %v447, %v276
    %v449 = vadd.f32 %v446, %v448
    %v450 = vstv %s169
    %v451 = vmul.f32 %v450, %v284
    %v452 = vadd.f32 %v449, %v451
    %v453 = vstv %s170
    %v454 = vmul.f32 %v453, %v292
    %v455 = vadd.f32 %v452, %v454
    %v456 = vstv %s171
    %v457 = vmul.f32 %v456, %v300
    %v458 = vadd.f32 %v455, %v457
    %v459 = vstv %s172
    %v460 = vmul.f32 %v459, %v308
    %v461 = vadd.f32 %v458, %v460
    %v462 = vstv %s173
    %v463 = vmul.f32 %v462, %v316
    %v464 = vadd.f32 %v461, %v463
    %v465 = vstv %s174
    %v466 = vmul.f32 %v465, %v324
    %v467 = vadd.f32 %v464, %v466
    %v468 = vstv %s175
    %v469 = vmul.f32 %v468, %v332
    %v470 = vadd.f32 %v467, %v469
    %v471 = vstv %s176
    %v472 = vmul.f32 %v471, %v340
    %v473 = vadd.f32 %v470, %v472
    %v474 = vstv %s240
    %v475 = vadd.f32 %v473, %v474
    %v476 = vmax.f32 %v475, 0.0
    %v477 = vstv %s250
    %v478 = vmul.f32 %v477, %v476
    %v479 = vadd.f32 %v444, %v478
    %v480 = vstv %s177
    %v481 = vmul.f32 %v480, %v268
    %v482 = vstv %s178
    %v483 = vmul.f32 %v482, %v276
    %v484 = vadd.f32 %v481, %v483
    %v485 = vstv %s179
    %v486 = vmul.f32 %v485, %v284
    %v487 = vadd.f32 %v484, %v486
    %v488 = vstv %s180
    %v489 = vmul.f32 %v488, %v292
    %v490 = vadd.f32 %v487, %v489
    %v491 = vstv %s181
    %v492 = vmul.f32 %v491, %v300
    %v493 = vadd.f32 %v490, %v492
    %v494 = vstv %s182
    %v495 = vmul.f32 %v494, %v308
    %v496 = vadd.f32 %v493, %v495
    %v497 = vstv %s183
    %v498 = vmul.f32 %v497, %v316
    %v499 = vadd.f32 %v496, %v498
    %v500 = vstv %s184
    %v501 = vmul.f32 %v500, %v324
    %v502 = vadd.f32 %v499, %v501
    %v503 = vstv %s185
    %v504 = vmul.f32 %v503, %v332
    %v505 = vadd.f32 %v502, %v504
    %v506 = vstv %s186
    %v507 = vmul.f32 %v506, %v340
    %v508 = vadd.f32 %v505, %v507
    %v509 = vstv %s241
    %v510 = vadd.f32 %v508, %v509
    %v511 = vmax.f32 %v510, 0.0
    %v512 = vstv %s251
    %v513 = vmul.f32 %v512, %v511
    %v514 = vadd.f32 %v479, %v513
    %v515 = vstv %s187
    %v516 = vmul.f32 %v515, %v268
    %v517 = vstv %s188
    %v518 = vmul.f32 %v517, %v276
    %v519 = vadd.f32 %v516, %v518
    %v520 = vstv %s189
    %v521 = vmul.f32 %v520, %v284
    %v522 = vadd.f32 %v519, %v521
    %v523 = vstv %s190
    %v524 = vmul.f32 %v523, %v292
    %v525 = vadd.f32 %v522, %v524
    %v526 = vstv %s191
    %v527 = vmul.f32 %v526, %v300
    %v528 = vadd.f32 %v525, %v527
    %v529 = vstv %s192
    %v530 = vmul.f32 %v529, %v308
    %v531 = vadd.f32 %v528, %v530
    %v532 = vstv %s193
    %v533 = vmul.f32 %v532, %v316
    %v534 = vadd.f32 %v531, %v533
    %v535 = vstv %s194
    %v536 = vmul.f32 %v535, %v324
    %v537 = vadd.f32 %v534, %v536
    %v538 = vstv %s195
    %v539 = vmul.f32 %v538, %v332
    %v540 = vadd.f32 %v537, %v539
    %v541 = vstv %s196
    %v542 = vmul.f32 %v541, %v340
    %v543 = vadd.f32 %v540, %v542
    %v544 = vstv %s242
    %v545 = vadd.f32 %v543, %v544
    %v546 = vmax.f32 %v545, 0.0
    %v547 = vstv %s252
    %v548 = vmul.f32 %v547, %v546
    %v549 = vadd.f32 %v514, %v548
    %v550 = vstv %s197
    %v551 = vmul.f32 %v550, %v268
    %v552 = vstv %s198
    %v553 = vmul.f32 %v552, %v276
    %v554 = vadd.f32 %v551, %v553
    %v555 = vstv %s199
    %v556 = vmul.f32 %v555, %v284
    %v557 = vadd.f32 %v554, %v556
    %v558 = vstv %s200
    %v559 = vmul.f32 %v558, %v292
    %v560 = vadd.f32 %v557, %v559
    %v561 = vstv %s201
    %v562 = vmul.f32 %v561, %v300
    %v563 = vadd.f32 %v560, %v562
    %v564 = vstv %s202
    %v565 = vmul.f32 %v564, %v308
    %v566 = vadd.f32 %v563, %v565
    %v567 = vstv %s203
    %v568 = vmul.f32 %v567, %v316
    %v569 = vadd.f32 %v566, %v568
    %v570 = vstv %s204
    %v571 = vmul.f32 %v570, %v324
    %v572 = vadd.f32 %v569, %v571
    %v573 = vstv %s205
    %v574 = vmul.f32 %v573, %v332
    %v575 = vadd.f32 %v572, %v574
    %v576 = vstv %s206
    %v577 = vmul.f32 %v576, %v340
    %v578 = vadd.f32 %v575, %v577
    %v579 = vstv %s243
    %v580 = vadd.f32 %v578, %v579
    %v581 = vmax.f32 %v580, 0.0
    %v582 = vstv %s253
    %v583 = vmul.f32 %v582, %v581
    %v584 = vadd.f32 %v549, %v583
    %v585 = vstv %s207
    %v586 = vmul.f32 %v585, %v268
    %v587 = vstv %s208
    %v588 = vmul.f32 %v587, %v276
    %v589 = vadd.f32 %v586, %v588
    %v590 = vstv %s209
    %v591 = vmul.f32 %v590, %v284
    %v592 = vadd.f32 %v589, %v591
    %v593 = vstv %s210
    %v594 = vmul.f32 %v593, %v292
    %v595 = vadd.f32 %v592, %v594
    %v596 = vstv %s211
    %v597 = vmul.f32 %v596, %v300
    %v598 = vadd.f32 %v595, %v597
    %v599 = vstv %s212
    %v600 = vmul.f32 %v599, %v308
    %v601 = vadd.f32 %v598, %v600
    %v602 = vstv %s213
    %v603 = vmul.f32 %v602, %v316
    %v604 = vadd.f32 %v601, %v603
    %v605 = vstv %s214
    %v606 = vmul.f32 %v605, %v324
    %v607 = vadd.f32 %v604, %v606
    %v608 = vstv %s215
    %v609 = vmul.f32 %v608, %v332
    %v610 = vadd.f32 %v607, %v609
    %v611 = vstv %s216
    %v612 = vmul.f32 %v611, %v340
    %v613 = vadd.f32 %v610, %v612
    %v614 = vstv %s244
    %v615 = vadd.f32 %v613, %v614
    %v616 = vmax.f32 %v615, 0.0
    %v617 = vstv %s254
    %v618 = vmul.f32 %v617, %v616
    %v619 = vadd.f32 %v584, %v618
    %v620 = vstv %s217
    %v621 = vmul.f32 %v620, %v268
    %v622 = vstv %s218
    %v623 = vmul.f32 %v622, %v276
    %v624 = vadd.f32 %v621, %v623
    %v625 = vstv %s219
    %v626 = vmul.f32 %v625, %v284
    %v627 = vadd.f32 %v624, %v626
    %v628 = vstv %s220
    %v629 = vmul.f32 %v628, %v292
    %v630 = vadd.f32 %v627, %v629
    %v631 = vstv %s221
    %v632 = vmul.f32 %v631, %v300
    %v633 = vadd.f32 %v630, %v632
    %v634 = vstv %s222
    %v635 = vmul.f32 %v634, %v308
    %v636 = vadd.f32 %v633, %v635
    %v637 = vstv %s223
    %v638 = vmul.f32 %v637, %v316
    %v639 = vadd.f32 %v636, %v638
    %v640 = vstv %s224
    %v641 = vmul.f32 %v640, %v324
    %v642 = vadd.f32 %v639, %v641
    %v643 = vstv %s225
    %v644 = vmul.f32 %v643, %v332
    %v645 = vadd.f32 %v642, %v644
    %v646 = vstv %s226
    %v647 = vmul.f32 %v646, %v340
    %v648 = vadd.f32 %v645, %v647
    %v649 = vstv %s245
    %v650 = vadd.f32 %v648, %v649
    %v651 = vmax.f32 %v650, 0.0
    %v652 = vstv %s255
    %v653 = vmul.f32 %v652, %v651
    %v654 = vadd.f32 %v619, %v653
    %v655 = vstv %s227
    %v656 = vmul.f32 %v655, %v268
    %v657 = vstv %s228
    %v658 = vmul.f32 %v657, %v276
    %v659 = vadd.f32 %v656, %v658
    %v660 = vstv %s229
    %v661 = vmul.f32 %v660, %v284
    %v662 = vadd.f32 %v659, %v661
    %v663 = vstv %s230
    %v664 = vmul.f32 %v663, %v292
    %v665 = vadd.f32 %v662, %v664
    %v666 = vstv %s231
    %v667 = vmul.f32 %v666, %v300
    %v668 = vadd.f32 %v665, %v667
    %v669 = vstv %s232
    %v670 = vmul.f32 %v669, %v308
    %v671 = vadd.f32 %v668, %v670
    %v672 = vstv %s233
    %v673 = vmul.f32 %v672, %v316
    %v674 = vadd.f32 %v671, %v673
    %v675 = vstv %s234
    %v676 = vmul.f32 %v675, %v324
    %v677 = vadd.f32 %v674, %v676
    %v678 = vstv %s235
    %v679 = vmul.f32 %v678, %v332
    %v680 = vadd.f32 %v677, %v679
    %v681 = vstv %s236
    %v682 = vmul.f32 %v681, %v340
    %v683 = vadd.f32 %v680, %v682
    %v684 = vstv %s246
    %v685 = vadd.f32 %v683, %v684
    %v686 = vmax.f32 %v685, 0.0
    %v687 = vstv %s256
    %v688 = vmul.f32 %v687, %v686
    %v689 = vadd.f32 %v654, %v688
    %v690 = vstv %s257
    %v691 = vadd.f32 %v689, %v690
    %692 = vst [vmem:[#allocation14] sm:$0xff] %v691
    // Predicated region
    $region54: #{tpu_custom_call.1} parent=1 // pred_check
      _
    $region55: #{tpu_custom_call.1} parent=1 // pred_check_branch
      %694 = sbr.rel (0) target = $region57
    $region56: #{tpu_custom_call.1} parent=1 // pred_region
      %696 = vsyncadd [#allocation5], 0
      %s698 = sshll.u32 [#allocation14], 4
      %s699 = int_to_ptr.vmem [resolvable:$true] %s698
      %s700 = sshll.u32 %s7, 4
      %s701 = int_to_ptr.hbm [resolvable:$true] %s700
      %703 = dma.vmem_to_hbm [thread:$0]  %s699, 128, %s701, [#allocation5]
    $region57: #{tpu_custom_call.1} parent=1 // pred_fallthru
      _
    // Predicated region
    $region58: #{tpu_custom_call.1} parent=1 // pred_check
      _
    $region59: #{tpu_custom_call.1} parent=1 // pred_check_branch
      %705 = sbr.rel (0) target = $region61
    $region60: #{tpu_custom_call.1} parent=1 // pred_region
      %707 = dma.done [#allocation5], 128
    $region61: #{tpu_custom_call.1} parent=1 // pred_fallthru
      _
    %708 = vsyncpa [#allocation4], 1
    %709 = vsyncpa [#allocation5], 1
    %710 = vsyncpa [#allocation6], 1
    %711 = vsyncpa [#allocation8], 1
    %712 = vsyncpa [#allocation11], 1

</llo_original>
